<compile_context>
chip_gen: v6e
topology: v6e:2x2x1
jax: 0.10.0
libtpu: 0.0.40
codegen_flags: <defaults>
</compile_context>

<pallas_src>
import functools

import jax
import jax.numpy as jnp
from jax.experimental import pallas as pl
from jax.experimental.pallas import tpu as pltpu


# ---------------------------------------------------------------------------
# Fused (whole-image) kernel: one grid step per TensorCore.
# ---------------------------------------------------------------------------
def _rb_fused_kernel(x_ref, w1_ref, b1_ref, w2_ref, b2_ref,
                     cw1_ref, cb1_ref, cw2_ref, cb2_ref, o_ref, *, gb, hw):
    """Shapes (per grid step):
      x_ref, o_ref  : (C, gb*hw) f32   (C on sublanes, batch*spatial on lanes)
      w1_ref, w2_ref: (C, C)     bf16  (conv weights, (C_out, C_in))
      b1_ref, b2_ref: (C, 1)     f32
      cw1_ref (Cr,C)  cb1_ref (Cr,1)  cw2_ref (C,Cr)  cb2_ref (C,1)
    """
    x = x_ref[...]                                            # (C, gb*hw) f32

    # conv1 (1x1) + ReLU, conv2 (1x1): bf16 MXU inputs, f32 accumulation.
    # Batch folded into N -> exactly two MXU issues per step.
    h = jnp.dot(w1_ref[...], x.astype(jnp.bfloat16),
                preferred_element_type=jnp.float32) + b1_ref[...]
    h = jnp.maximum(h, 0.0)
    y = jnp.dot(w2_ref[...], h.astype(jnp.bfloat16),
                preferred_element_type=jnp.float32) + b2_ref[...]

    # CALayer: per-image global average pool, batched into one (C, gb) block so
    # the squeeze-excite is two MXU ops with N=gb (not 2*gb N=1 matvecs).
    cols = [jnp.sum(y[:, b * hw:(b + 1) * hw], axis=1, keepdims=True)
            for b in range(gb)]
    pooled = (cols[0] if gb == 1 else jnp.concatenate(cols, axis=1))
    pooled = pooled * (1.0 / hw)                               # (C, gb)
    s = jnp.maximum(jnp.dot(cw1_ref[...], pooled,
                            preferred_element_type=jnp.float32) + cb1_ref[...],
                    0.0)                                       # (Cr, gb)
    gate = jax.nn.sigmoid(jnp.dot(cw2_ref[...], s,
                                  preferred_element_type=jnp.float32)
                          + cb2_ref[...])                      # (C, gb)

    # Gate (lane broadcast) + residual.  Static 128-aligned lane slices ->
    # unmasked, lane-dense stores.  gb stays small here; switch to
    # lax.fori_loop(unroll=True) if it ever grows beyond ~4.
    for b in range(gb):
        sl = slice(b * hw, (b + 1) * hw)
        o_ref[:, sl] = y[:, sl] * gate[:, b:b + 1] + x[:, sl]


# ---------------------------------------------------------------------------
# HW-tiled kernel (production image sizes): two passes over the spatial tiles
# of each image; pass 0 accumulates the channel-attention pool in VMEM scratch,
# pass 1 recomputes the (cheap, mem-bound) conv path and applies gate+residual.
# ---------------------------------------------------------------------------
def _rb_tiled_kernel(x_ref, w1_ref, b1_ref, w2_ref, b2_ref,
                     cw1t_ref, cb1r_ref, cw2_ref, cb2_ref, o_ref,
                     pool_ref, gate_ref, *, hw):
    """x_ref/o_ref: (C, hw_tile).  cw1t_ref: (C, Cr) (pre-transposed),
    cb1r_ref: (1, Cr).  pool_ref/gate_ref: (C, 1) f32 VMEM scratch."""
    p = pl.program_id(1)       # 0: pooling pass, 1: gate + write pass
    t = pl.program_id(2)       # spatial tile index within the image

    x = x_ref[...]                                            # (C, hw_tile)
    h = jnp.maximum(jnp.dot(w1_ref[...], x.astype(jnp.bfloat16),
                            preferred_element_type=jnp.float32) + b1_ref[...],
                    0.0)
    y = jnp.dot(w2_ref[...], h.astype(jnp.bfloat16),
                preferred_element_type=jnp.float32) + b2_ref[...]

    @pl.when(jnp.logical_and(p == 0, t == 0))
    def _():
        pool_ref[...] = jnp.zeros_like(pool_ref)

    @pl.when(p == 0)
    def _():
        pool_ref[...] += jnp.sum(y, axis=1, keepdims=True)

    @pl.when(jnp.logical_and(p == 1, t == 0))
    def _():
        # Squeeze-excite on the VPU/XLU (broadcast-multiply + reduce) with the
        # pre-transposed weight: no N=1 MXU matvecs, no in-kernel transposes.
        pooled = pool_ref[...] * (1.0 / hw)                    # (C, 1)
        s = jnp.maximum(jnp.sum(cw1t_ref[...] * pooled, axis=0, keepdims=True)
                        + cb1r_ref[...], 0.0)                  # (1, Cr)
        gate_ref[...] = jax.nn.sigmoid(
            jnp.sum(cw2_ref[...] * s, axis=1, keepdims=True) + cb2_ref[...])

    @pl.when(p == 1)
    def _():
        o_ref[...] = y * gate_ref[...] + x                     # lane-dense store


# ---------------------------------------------------------------------------
# Wrapper
# ---------------------------------------------------------------------------
def _default_num_tensorcores():
    # Best-effort: 2-TensorCore chips (v7x-class) split grid axes marked
    # "parallel" across cores; v5e/v6e have one core.  Override via num_cores.
    try:
        kind = jax.devices()[0].device_kind.lower()
    except Exception:
        return 1
    return 2 if "v7" in kind else 1


def prepare_rb_params(params):
    """One-time parameter prep (hoisted out of the per-call wrapper): bf16
    conv weights (MXU-native, halves weight HBM traffic), f32 everything else."""
    w1, b1, w2, b2, cw1, cb1, cw2, cb2 = params
    return (w1.astype(jnp.bfloat16), b1.astype(jnp.float32),
            w2.astype(jnp.bfloat16), b2.astype(jnp.float32),
            cw1.astype(jnp.float32), cb1.astype(jnp.float32),
            cw2.astype(jnp.float32), cb2.astype(jnp.float32))


def _const_spec(arr, single_buffer):
    nd = arr.ndim
    idx = lambda *_unused, _nd=nd: (0,) * _nd
    if single_buffer:
        # Constants never change across grid steps: single-buffer them so the
        # duplicate copy doesn't eat VMEM once C grows (matters first on v7x's
        # 64 MiB VMEM).
        return pl.BlockSpec(arr.shape, idx, pipeline_mode=pl.Buffered(1))
    return pl.BlockSpec(arr.shape, idx)


def rb_forward(x_nchw, prepared_params, *, hw_tile=None, num_cores=None,
               vmem_limit_bytes=None):
    """RB forward.  x_nchw: (B, C, H, W) float32 -> (B, C, H, W) float32.

    hw_tile=None : fused whole-image path (best at small images; latency regime).
    hw_tile=int  : HW-tiled pipelined path for large images.  Must be a multiple
                   of 128 dividing H*W.  Size per generation: keep the x/o
                   double buffers (~4*C*hw_tile*4 B) within ~40 MiB on v7x
                   (64 MiB VMEM); v5e/v6e (128 MiB) can take ~2x larger tiles
                   with vmem_limit_bytes raised.
    """
    B, C, H, W = x_nchw.shape
    HW = H * W
    w1b, b1, w2b, b2, cw1, cb1, cw2, cb2 = prepared_params

    # Channels on sublanes, batch*spatial on lanes.  The single wrapper
    # transpose is amortized over the whole NRB stack in the real model.
    x2d = jnp.transpose(x_nchw, (1, 0, 2, 3)).reshape(C, B * HW)

    if hw_tile is None:
        if num_cores is None:
            num_cores = _default_num_tensorcores()
        if B > 1 and num_cores > 1 and B % num_cores == 0:
            grid, gb = (num_cores,), B // num_cores   # one step per TensorCore
        else:
            grid, gb = (1,), B                        # single fused step
        grid_dims = ("parallel",)
        xo_in = pl.BlockSpec((C, gb * HW), lambda i: (0, i))
        xo_out = xo_in
        kernel = functools.partial(_rb_fused_kernel, gb=gb, hw=HW)
        consts = (w1b, b1, w2b, b2, cw1, cb1, cw2, cb2)
        scratch = []
        block_bytes = C * gb * HW * 4
    else:
        assert hw_tile % 128 == 0 and HW % hw_tile == 0, \
            "hw_tile must be a multiple of 128 dividing H*W"
        tpi = HW // hw_tile                           # spatial tiles per image
        grid = (B, 2, tpi)
        grid_dims = ("parallel", "arbitrary", "arbitrary")
        xo_in = pl.BlockSpec((C, hw_tile), lambda b, p, t: (0, b * tpi + t))
        # Output parks on the image's first tile during the pooling pass so no
        # block is written back before pass 1 produced its real contents.
        xo_out = pl.BlockSpec(
            (C, hw_tile),
            lambda b, p, t: (0, b * tpi + jnp.where(p == 1, t, 0)))
        kernel = functools.partial(_rb_tiled_kernel, hw=HW)
        # Squeeze-excite weights pre-transposed/reshaped (free, outside the
        # kernel) so the in-kernel gate is pure VPU/XLU.
        consts = (w1b, b1, w2b, b2, cw1.T, cb1.reshape(1, -1), cw2, cb2)
        scratch = [pltpu.VMEM((C, 1), jnp.float32),   # pool accumulator
                   pltpu.VMEM((C, 1), jnp.float32)]   # gate
        block_bytes = C * hw_tile * 4

    const_bytes = sum(int(a.size) * a.dtype.itemsize for a in consts)
    if vmem_limit_bytes is None:
        # x + o double-buffered + constants + margin, clamped to a budget that
        # is safe on every generation (v7x: 64 MiB physical VMEM).
        need = 4 * block_bytes + 4 * const_bytes + (4 << 20)
        vmem_limit_bytes = int(min(max(need, 16 << 20), 48 << 20))

    def call(single_buffer_consts):
        in_specs = [xo_in] + [_const_spec(a, single_buffer_consts)
                              for a in consts]
        return pl.pallas_call(
            kernel,
            out_shape=jax.ShapeDtypeStruct((C, B * HW), jnp.float32),
            grid_spec=pltpu.PrefetchScalarGridSpec(
                num_scalar_prefetch=0,
                grid=grid,
                in_specs=in_specs,
                out_specs=xo_out,
                scratch_shapes=scratch),
            compiler_params=pltpu.CompilerParams(
                dimension_semantics=grid_dims,
                vmem_limit_bytes=vmem_limit_bytes),
        )(x2d, *consts)

    try:
        out2d = call(single_buffer_consts=True)
    except Exception:
        # pipeline_mode / pl.Buffered(1) unsupported by this JAX version:
        # fall back to default double-buffered constant blocks (harmless here).
        out2d = call(single_buffer_consts=False)

    return jnp.transpose(out2d.reshape(C, B, H, W), (1, 0, 2, 3))


# ---------------------------------------------------------------------------
# Pure-JAX reference and parameter construction
# ---------------------------------------------------------------------------
def rb_reference(x_nchw, params):
    """Pure-JAX f32 reference matching the PyTorch RB forward."""
    w1, b1, w2, b2, cw1, cb1, cw2, cb2 = params
    B, C, H, W = x_nchw.shape
    x = x_nchw.reshape(B, C, H * W)
    h = jnp.maximum(jnp.einsum('oc,bcn->bon', w1, x) + b1, 0.0)
    y = jnp.einsum('oc,bcn->bon', w2, h) + b2
    pooled = jnp.mean(y, axis=2, keepdims=True)               # (B, C, 1)
    s = jnp.maximum(jnp.einsum('rc,bcn->brn', cw1, pooled) + cb1, 0.0)
    s = jax.nn.sigmoid(jnp.einsum('cr,brn->bcn', cw2, s) + cb2)
    return (y * s + x).reshape(B, C, H, W)


def make_params(key, filters, reduction=16):
    cr = max(filters // reduction, 1)
    ks = jax.random.split(key, 8)
    scale = 0.1
    w1 = scale * jax.random.normal(ks[0], (filters, filters), jnp.float32)
    b1 = scale * jax.random.normal(ks[1], (filters, 1), jnp.float32)
    w2 = scale * jax.random.normal(ks[2], (filters, filters), jnp.float32)
    b2 = scale * jax.random.normal(ks[3], (filters, 1), jnp.float32)
    cw1 = scale * jax.random.normal(ks[4], (cr, filters), jnp.float32)
    cb1 = scale * jax.random.normal(ks[5], (cr, 1), jnp.float32)
    cw2 = scale * jax.random.normal(ks[6], (filters, cr), jnp.float32)
    cb2 = scale * jax.random.normal(ks[7], (filters, 1), jnp.float32)
    return (w1, b1, w2, b2, cw1, cb1, cw2, cb2)


if __name__ == "__main__":
    key = jax.random.PRNGKey(0)
    kx1, kx2, kp = jax.random.split(key, 3)

    C = 32                                   # filters; reduction 16 -> Cr = 2
    params = make_params(kp, C)
    prepared = prepare_rb_params(params)

    # 1) Fused whole-image path (small images / latency regime).
    B1, H1, W1 = 2, 16, 16
    x1 = jax.random.normal(kx1, (B1, C, H1, W1), jnp.float32)
    out1 = jax.block_until_ready(rb_forward(x1, prepared))
    err1 = float(jnp.max(jnp.abs(out1 - rb_reference(x1, params))))
    assert out1.shape == (B1, C, H1, W1)
    # conv matmuls use bf16 inputs (f32 accumulate) -> loosened tolerance.
    assert err1 < 2e-2, f"fused path mismatch vs reference: max abs err {err1}"

    # 2) HW-tiled, pipelined path (production-size structure, exercised small).
    B2, H2, W2 = 2, 32, 32
    x2 = jax.random.normal(kx2, (B2, C, H2, W2), jnp.float32)
    out2 = jax.block_until_ready(rb_forward(x2, prepared, hw_tile=256))
    err2 = float(jnp.max(jnp.abs(out2 - rb_reference(x2, params))))
    assert out2.shape == (B2, C, H2, W2)
    assert err2 < 2e-2, f"tiled path mismatch vs reference: max abs err {err2}"

    print("KERNEL_OK")
</pallas_src>

<mosaic_0001>
module attributes {stable_mosaic.version = 11 : i64} {
  func.func @_rb_fused_kernel(%arg0: i32, %arg1: memref<32x512xf32, #tpu.memory_space<vmem>>, %arg2: memref<32x32xbf16, #tpu.memory_space<vmem>>, %arg3: memref<32x1xf32, #tpu.memory_space<vmem>>, %arg4: memref<32x32xbf16, #tpu.memory_space<vmem>>, %arg5: memref<32x1xf32, #tpu.memory_space<vmem>>, %arg6: memref<2x32xf32, #tpu.memory_space<vmem>>, %arg7: memref<2x1xf32, #tpu.memory_space<vmem>>, %arg8: memref<32x2xf32, #tpu.memory_space<vmem>>, %arg9: memref<32x1xf32, #tpu.memory_space<vmem>>, %arg10: memref<32x512xf32, #tpu.memory_space<vmem>>) attributes {dimension_semantics = [#tpu.dimension_semantics<parallel>], iteration_bounds = array<i64: 1>, scalar_prefetch = 0 : i64, scratch_operands = 0 : i64, tpu.core_type = #tpu.core_type<tc>, window_params = [{transform_indices = @transform_0, window_bounds = array<i64: 32, 512>}, {pipeline_mode = #tpu.pipeline_mode<synchronous>, transform_indices = @transform_1, window_bounds = array<i64: 32, 32>}, {pipeline_mode = #tpu.pipeline_mode<synchronous>, transform_indices = @transform_2, window_bounds = array<i64: 32, 1>}, {pipeline_mode = #tpu.pipeline_mode<synchronous>, transform_indices = @transform_3, window_bounds = array<i64: 32, 32>}, {pipeline_mode = #tpu.pipeline_mode<synchronous>, transform_indices = @transform_4, window_bounds = array<i64: 32, 1>}, {pipeline_mode = #tpu.pipeline_mode<synchronous>, transform_indices = @transform_5, window_bounds = array<i64: 2, 32>}, {pipeline_mode = #tpu.pipeline_mode<synchronous>, transform_indices = @transform_6, window_bounds = array<i64: 2, 1>}, {pipeline_mode = #tpu.pipeline_mode<synchronous>, transform_indices = @transform_7, window_bounds = array<i64: 32, 2>}, {pipeline_mode = #tpu.pipeline_mode<synchronous>, transform_indices = @transform_8, window_bounds = array<i64: 32, 1>}, {transform_indices = @transform_9, window_bounds = array<i64: 32, 512>}]} {
    %c0 = arith.constant 0 : index
    %c0_0 = arith.constant 0 : index
    %0 = vector.load %arg1[%c0, %c0_0] : memref<32x512xf32, #tpu.memory_space<vmem>>, vector<32x512xf32>
    %c0_1 = arith.constant 0 : index
    %c0_2 = arith.constant 0 : index
    %1 = vector.load %arg2[%c0_1, %c0_2] : memref<32x32xbf16, #tpu.memory_space<vmem>>, vector<32x32xbf16>
    %2 = arith.truncf %0 : vector<32x512xf32> to vector<32x512xbf16>
    %cst = arith.constant dense<0.000000e+00> : vector<32x512xf32>
    %3 = tpu.matmul %1, %2, %cst {dimension_numbers = #tpu.dot_dimension_numbers<[1], [0], [0], [1], [0, 0, 1, 1], [], []>} : vector<32x32xbf16>, vector<32x512xbf16>, vector<32x512xf32> -> vector<32x512xf32>
    %c0_3 = arith.constant 0 : index
    %c0_4 = arith.constant 0 : index
    %4 = vector.load %arg3[%c0_3, %c0_4] : memref<32x1xf32, #tpu.memory_space<vmem>>, vector<32x1xf32>
    %5 = vector.broadcast %4 : vector<32x1xf32> to vector<32x512xf32>
    %6 = arith.addf %3, %5 : vector<32x512xf32>
    %cst_5 = arith.constant 0.000000e+00 : f32
    %7 = vector.broadcast %cst_5 : f32 to vector<32x512xf32>
    %8 = arith.maximumf %6, %7 : vector<32x512xf32>
    %c0_6 = arith.constant 0 : index
    %c0_7 = arith.constant 0 : index
    %9 = vector.load %arg4[%c0_6, %c0_7] : memref<32x32xbf16, #tpu.memory_space<vmem>>, vector<32x32xbf16>
    %10 = arith.truncf %8 : vector<32x512xf32> to vector<32x512xbf16>
    %cst_8 = arith.constant dense<0.000000e+00> : vector<32x512xf32>
    %11 = tpu.matmul %9, %10, %cst_8 {dimension_numbers = #tpu.dot_dimension_numbers<[1], [0], [0], [1], [0, 0, 1, 1], [], []>} : vector<32x32xbf16>, vector<32x512xbf16>, vector<32x512xf32> -> vector<32x512xf32>
    %c0_9 = arith.constant 0 : index
    %c0_10 = arith.constant 0 : index
    %12 = vector.load %arg5[%c0_9, %c0_10] : memref<32x1xf32, #tpu.memory_space<vmem>>, vector<32x1xf32>
    %13 = vector.broadcast %12 : vector<32x1xf32> to vector<32x512xf32>
    %14 = arith.addf %11, %13 : vector<32x512xf32>
    %15 = vector.extract_strided_slice %14 {offsets = [0, 0], sizes = [32, 256], strides = [1, 1]} : vector<32x512xf32> to vector<32x256xf32>
    %cst_11 = arith.constant dense<0.000000e+00> : vector<32xf32>
    %16 = vector.multi_reduction <add>, %15, %cst_11 [1] : vector<32x256xf32> to vector<32xf32>
    %17 = vector.shape_cast %16 : vector<32xf32> to vector<32x1xf32>
    %18 = vector.extract_strided_slice %14 {offsets = [0, 256], sizes = [32, 256], strides = [1, 1]} : vector<32x512xf32> to vector<32x256xf32>
    %cst_12 = arith.constant dense<0.000000e+00> : vector<32xf32>
    %19 = vector.multi_reduction <add>, %18, %cst_12 [1] : vector<32x256xf32> to vector<32xf32>
    %20 = vector.shape_cast %19 : vector<32xf32> to vector<32x1xf32>
    %21 = tpu.concatenate %17, %20 in 1 : vector<32x1xf32>, vector<32x1xf32> -> vector<32x2xf32>
    %cst_13 = arith.constant 3.906250e-03 : f32
    %22 = vector.broadcast %cst_13 : f32 to vector<32x2xf32>
    %23 = arith.mulf %21, %22 : vector<32x2xf32>
    %c0_14 = arith.constant 0 : index
    %c0_15 = arith.constant 0 : index
    %24 = vector.load %arg6[%c0_14, %c0_15] : memref<2x32xf32, #tpu.memory_space<vmem>>, vector<2x32xf32>
    %cst_16 = arith.constant dense<0.000000e+00> : vector<2x2xf32>
    %25 = tpu.matmul %24, %23, %cst_16 {dimension_numbers = #tpu.dot_dimension_numbers<[1], [0], [0], [1], [0, 0, 1, 1], [], []>} : vector<2x32xf32>, vector<32x2xf32>, vector<2x2xf32> -> vector<2x2xf32>
    %c0_17 = arith.constant 0 : index
    %c0_18 = arith.constant 0 : index
    %26 = vector.load %arg7[%c0_17, %c0_18] : memref<2x1xf32, #tpu.memory_space<vmem>>, vector<2x1xf32>
    %27 = vector.broadcast %26 : vector<2x1xf32> to vector<2x2xf32>
    %28 = arith.addf %25, %27 : vector<2x2xf32>
    %cst_19 = arith.constant 0.000000e+00 : f32
    %29 = vector.broadcast %cst_19 : f32 to vector<2x2xf32>
    %30 = arith.maximumf %28, %29 : vector<2x2xf32>
    %c0_20 = arith.constant 0 : index
    %c0_21 = arith.constant 0 : index
    %31 = vector.load %arg8[%c0_20, %c0_21] : memref<32x2xf32, #tpu.memory_space<vmem>>, vector<32x2xf32>
    %cst_22 = arith.constant dense<0.000000e+00> : vector<32x2xf32>
    %32 = tpu.matmul %31, %30, %cst_22 {dimension_numbers = #tpu.dot_dimension_numbers<[1], [0], [0], [1], [0, 0, 1, 1], [], []>} : vector<32x2xf32>, vector<2x2xf32>, vector<32x2xf32> -> vector<32x2xf32>
    %c0_23 = arith.constant 0 : index
    %c0_24 = arith.constant 0 : index
    %33 = vector.load %arg9[%c0_23, %c0_24] : memref<32x1xf32, #tpu.memory_space<vmem>>, vector<32x1xf32>
    %34 = vector.broadcast %33 : vector<32x1xf32> to vector<32x2xf32>
    %35 = arith.addf %32, %34 : vector<32x2xf32>
    %36 = arith.negf %35 : vector<32x2xf32>
    %37 = math.exp %36 : vector<32x2xf32>
    %cst_25 = arith.constant 1.000000e+00 : f32
    %38 = vector.broadcast %cst_25 : f32 to vector<32x2xf32>
    %39 = arith.addf %38, %37 : vector<32x2xf32>
    %40 = arith.divf %38, %39 : vector<32x2xf32>
    %41 = vector.extract_strided_slice %14 {offsets = [0, 0], sizes = [32, 256], strides = [1, 1]} : vector<32x512xf32> to vector<32x256xf32>
    %42 = vector.extract_strided_slice %40 {offsets = [0, 0], sizes = [32, 1], strides = [1, 1]} : vector<32x2xf32> to vector<32x1xf32>
    %43 = vector.broadcast %42 : vector<32x1xf32> to vector<32x256xf32>
    %44 = arith.mulf %41, %43 : vector<32x256xf32>
    %45 = vector.extract_strided_slice %0 {offsets = [0, 0], sizes = [32, 256], strides = [1, 1]} : vector<32x512xf32> to vector<32x256xf32>
    %46 = arith.addf %44, %45 : vector<32x256xf32>
    %c0_26 = arith.constant 0 : index
    %c0_27 = arith.constant 0 : index
    %47 = vector.load %arg10[%c0_26, %c0_27] : memref<32x512xf32, #tpu.memory_space<vmem>>, vector<32x256xf32>
    tpu.vector_store %arg10[%c0_26, %c0_27], %46 {strides = array<i32>} : memref<32x512xf32, #tpu.memory_space<vmem>>, vector<32x256xf32>,
    %48 = vector.extract_strided_slice %14 {offsets = [0, 256], sizes = [32, 256], strides = [1, 1]} : vector<32x512xf32> to vector<32x256xf32>
    %49 = vector.extract_strided_slice %40 {offsets = [0, 1], sizes = [32, 1], strides = [1, 1]} : vector<32x2xf32> to vector<32x1xf32>
    %50 = vector.broadcast %49 : vector<32x1xf32> to vector<32x256xf32>
    %51 = arith.mulf %48, %50 : vector<32x256xf32>
    %52 = vector.extract_strided_slice %0 {offsets = [0, 256], sizes = [32, 256], strides = [1, 1]} : vector<32x512xf32> to vector<32x256xf32>
    %53 = arith.addf %51, %52 : vector<32x256xf32>
    %c0_28 = arith.constant 0 : index
    %c256 = arith.constant 256 : index
    %54 = vector.load %arg10[%c0_28, %c256] : memref<32x512xf32, #tpu.memory_space<vmem>>, vector<32x256xf32>
    tpu.vector_store %arg10[%c0_28, %c256], %53 {strides = array<i32>} : memref<32x512xf32, #tpu.memory_space<vmem>>, vector<32x256xf32>,
    return
  }
  func.func @transform_0(%arg0: i32) -> (i32, i32) {
    %c0_i32 = arith.constant 0 : i32
    %c0_i32_0 = arith.constant 0 : i32
    return %c0_i32, %arg0 : i32, i32
  }
  func.func @transform_1(%arg0: i32) -> (i32, i32) {
    %c0_i32 = arith.constant 0 : i32
    %c0_i32_0 = arith.constant 0 : i32
    %c0_i32_1 = arith.constant 0 : i32
    return %c0_i32, %c0_i32_0 : i32, i32
  }
  func.func @transform_2(%arg0: i32) -> (i32, i32) {
    %c0_i32 = arith.constant 0 : i32
    %c0_i32_0 = arith.constant 0 : i32
    %c0_i32_1 = arith.constant 0 : i32
    return %c0_i32, %c0_i32_0 : i32, i32
  }
  func.func @transform_3(%arg0: i32) -> (i32, i32) {
    %c0_i32 = arith.constant 0 : i32
    %c0_i32_0 = arith.constant 0 : i32
    %c0_i32_1 = arith.constant 0 : i32
    return %c0_i32, %c0_i32_0 : i32, i32
  }
  func.func @transform_4(%arg0: i32) -> (i32, i32) {
    %c0_i32 = arith.constant 0 : i32
    %c0_i32_0 = arith.constant 0 : i32
    %c0_i32_1 = arith.constant 0 : i32
    return %c0_i32, %c0_i32_0 : i32, i32
  }
  func.func @transform_5(%arg0: i32) -> (i32, i32) {
    %c0_i32 = arith.constant 0 : i32
    %c0_i32_0 = arith.constant 0 : i32
    %c0_i32_1 = arith.constant 0 : i32
    return %c0_i32, %c0_i32_0 : i32, i32
  }
  func.func @transform_6(%arg0: i32) -> (i32, i32) {
    %c0_i32 = arith.constant 0 : i32
    %c0_i32_0 = arith.constant 0 : i32
    %c0_i32_1 = arith.constant 0 : i32
    return %c0_i32, %c0_i32_0 : i32, i32
  }
  func.func @transform_7(%arg0: i32) -> (i32, i32) {
    %c0_i32 = arith.constant 0 : i32
    %c0_i32_0 = arith.constant 0 : i32
    %c0_i32_1 = arith.constant 0 : i32
    return %c0_i32, %c0_i32_0 : i32, i32
  }
  func.func @transform_8(%arg0: i32) -> (i32, i32) {
    %c0_i32 = arith.constant 0 : i32
    %c0_i32_0 = arith.constant 0 : i32
    %c0_i32_1 = arith.constant 0 : i32
    return %c0_i32, %c0_i32_0 : i32, i32
  }
  func.func @transform_9(%arg0: i32) -> (i32, i32) {
    %c0_i32 = arith.constant 0 : i32
    %c0_i32_0 = arith.constant 0 : i32
    return %c0_i32, %arg0 : i32, i32
  }
}

module attributes {stable_mosaic.version = 11 : i64} {
  func.func @_rb_fused_kernel(%arg0: i32, %arg1: memref<32x512xf32, #tpu.memory_space<vmem>>, %arg2: memref<32x32xbf16, #tpu.memory_space<vmem>>, %arg3: memref<32x1xf32, #tpu.memory_space<vmem>>, %arg4: memref<32x32xbf16, #tpu.memory_space<vmem>>, %arg5: memref<32x1xf32, #tpu.memory_space<vmem>>, %arg6: memref<2x32xf32, #tpu.memory_space<vmem>>, %arg7: memref<2x1xf32, #tpu.memory_space<vmem>>, %arg8: memref<32x2xf32, #tpu.memory_space<vmem>>, %arg9: memref<32x1xf32, #tpu.memory_space<vmem>>, %arg10: memref<32x512xf32, #tpu.memory_space<vmem>>) attributes {dimension_semantics = [#tpu.dimension_semantics<parallel>], iteration_bounds = array<i64: 1>, scalar_prefetch = 0 : i64, scratch_operands = 0 : i64, tpu.core_type = #tpu.core_type<tc>, window_params = [{transform_indices = @transform_0, window_bounds = array<i64: 32, 512>}, {pipeline_mode = #tpu.pipeline_mode<synchronous>, transform_indices = @transform_1, window_bounds = array<i64: 32, 32>}, {pipeline_mode = #tpu.pipeline_mode<synchronous>, transform_indices = @transform_2, window_bounds = array<i64: 32, 1>}, {pipeline_mode = #tpu.pipeline_mode<synchronous>, transform_indices = @transform_3, window_bounds = array<i64: 32, 32>}, {pipeline_mode = #tpu.pipeline_mode<synchronous>, transform_indices = @transform_4, window_bounds = array<i64: 32, 1>}, {pipeline_mode = #tpu.pipeline_mode<synchronous>, transform_indices = @transform_5, window_bounds = array<i64: 2, 32>}, {pipeline_mode = #tpu.pipeline_mode<synchronous>, transform_indices = @transform_6, window_bounds = array<i64: 2, 1>}, {pipeline_mode = #tpu.pipeline_mode<synchronous>, transform_indices = @transform_7, window_bounds = array<i64: 32, 2>}, {pipeline_mode = #tpu.pipeline_mode<synchronous>, transform_indices = @transform_8, window_bounds = array<i64: 32, 1>}, {transform_indices = @transform_9, window_bounds = array<i64: 32, 512>}]} {
    %c0 = arith.constant 0 : index
    %c0_0 = arith.constant 0 : index
    %0 = vector.load %arg1[%c0, %c0_0] : memref<32x512xf32, #tpu.memory_space<vmem>>, vector<32x512xf32>
    %c0_1 = arith.constant 0 : index
    %c0_2 = arith.constant 0 : index
    %1 = vector.load %arg2[%c0_1, %c0_2] : memref<32x32xbf16, #tpu.memory_space<vmem>>, vector<32x32xbf16>
    %2 = arith.truncf %0 : vector<32x512xf32> to vector<32x512xbf16>
    %cst = arith.constant dense<0.000000e+00> : vector<32x512xf32>
    %3 = tpu.matmul %1, %2, %cst {dimension_numbers = #tpu.dot_dimension_numbers<[1], [0], [0], [1], [0, 0, 1, 1], [], []>} : vector<32x32xbf16>, vector<32x512xbf16>, vector<32x512xf32> -> vector<32x512xf32>
    %c0_3 = arith.constant 0 : index
    %c0_4 = arith.constant 0 : index
    %4 = vector.load %arg3[%c0_3, %c0_4] : memref<32x1xf32, #tpu.memory_space<vmem>>, vector<32x1xf32>
    %5 = vector.broadcast %4 : vector<32x1xf32> to vector<32x512xf32>
    %6 = arith.addf %3, %5 : vector<32x512xf32>
    %cst_5 = arith.constant 0.000000e+00 : f32
    %7 = vector.broadcast %cst_5 : f32 to vector<32x512xf32>
    %8 = arith.maximumf %6, %7 : vector<32x512xf32>
    %c0_6 = arith.constant 0 : index
    %c0_7 = arith.constant 0 : index
    %9 = vector.load %arg4[%c0_6, %c0_7] : memref<32x32xbf16, #tpu.memory_space<vmem>>, vector<32x32xbf16>
    %10 = arith.truncf %8 : vector<32x512xf32> to vector<32x512xbf16>
    %cst_8 = arith.constant dense<0.000000e+00> : vector<32x512xf32>
    %11 = tpu.matmul %9, %10, %cst_8 {dimension_numbers = #tpu.dot_dimension_numbers<[1], [0], [0], [1], [0, 0, 1, 1], [], []>} : vector<32x32xbf16>, vector<32x512xbf16>, vector<32x512xf32> -> vector<32x512xf32>
    %c0_9 = arith.constant 0 : index
    %c0_10 = arith.constant 0 : index
    %12 = vector.load %arg5[%c0_9, %c0_10] : memref<32x1xf32, #tpu.memory_space<vmem>>, vector<32x1xf32>
    %13 = vector.broadcast %12 : vector<32x1xf32> to vector<32x512xf32>
    %14 = arith.addf %11, %13 : vector<32x512xf32>
    %15 = vector.extract_strided_slice %14 {offsets = [0, 0], sizes = [32, 256], strides = [1, 1]} : vector<32x512xf32> to vector<32x256xf32>
    %cst_11 = arith.constant dense<0.000000e+00> : vector<32xf32>
    %16 = vector.multi_reduction <add>, %15, %cst_11 [1] : vector<32x256xf32> to vector<32xf32>
    %17 = vector.shape_cast %16 : vector<32xf32> to vector<32x1xf32>
    %18 = vector.extract_strided_slice %14 {offsets = [0, 256], sizes = [32, 256], strides = [1, 1]} : vector<32x512xf32> to vector<32x256xf32>
    %cst_12 = arith.constant dense<0.000000e+00> : vector<32xf32>
    %19 = vector.multi_reduction <add>, %18, %cst_12 [1] : vector<32x256xf32> to vector<32xf32>
    %20 = vector.shape_cast %19 : vector<32xf32> to vector<32x1xf32>
    %21 = tpu.concatenate %17, %20 in 1 : vector<32x1xf32>, vector<32x1xf32> -> vector<32x2xf32>
    %cst_13 = arith.constant 3.906250e-03 : f32
    %22 = vector.broadcast %cst_13 : f32 to vector<32x2xf32>
    %23 = arith.mulf %21, %22 : vector<32x2xf32>
    %c0_14 = arith.constant 0 : index
    %c0_15 = arith.constant 0 : index
    %24 = vector.load %arg6[%c0_14, %c0_15] : memref<2x32xf32, #tpu.memory_space<vmem>>, vector<2x32xf32>
    %cst_16 = arith.constant dense<0.000000e+00> : vector<2x2xf32>
    %25 = tpu.matmul %24, %23, %cst_16 {dimension_numbers = #tpu.dot_dimension_numbers<[1], [0], [0], [1], [0, 0, 1, 1], [], []>} : vector<2x32xf32>, vector<32x2xf32>, vector<2x2xf32> -> vector<2x2xf32>
    %c0_17 = arith.constant 0 : index
    %c0_18 = arith.constant 0 : index
    %26 = vector.load %arg7[%c0_17, %c0_18] : memref<2x1xf32, #tpu.memory_space<vmem>>, vector<2x1xf32>
    %27 = vector.broadcast %26 : vector<2x1xf32> to vector<2x2xf32>
    %28 = arith.addf %25, %27 : vector<2x2xf32>
    %cst_19 = arith.constant 0.000000e+00 : f32
    %29 = vector.broadcast %cst_19 : f32 to vector<2x2xf32>
    %30 = arith.maximumf %28, %29 : vector<2x2xf32>
    %c0_20 = arith.constant 0 : index
    %c0_21 = arith.constant 0 : index
    %31 = vector.load %arg8[%c0_20, %c0_21] : memref<32x2xf32, #tpu.memory_space<vmem>>, vector<32x2xf32>
    %cst_22 = arith.constant dense<0.000000e+00> : vector<32x2xf32>
    %32 = tpu.matmul %31, %30, %cst_22 {dimension_numbers = #tpu.dot_dimension_numbers<[1], [0], [0], [1], [0, 0, 1, 1], [], []>} : vector<32x2xf32>, vector<2x2xf32>, vector<32x2xf32> -> vector<32x2xf32>
    %c0_23 = arith.constant 0 : index
    %c0_24 = arith.constant 0 : index
    %33 = vector.load %arg9[%c0_23, %c0_24] : memref<32x1xf32, #tpu.memory_space<vmem>>, vector<32x1xf32>
    %34 = vector.broadcast %33 : vector<32x1xf32> to vector<32x2xf32>
    %35 = arith.addf %32, %34 : vector<32x2xf32>
    %36 = arith.negf %35 : vector<32x2xf32>
    %37 = math.exp %36 : vector<32x2xf32>
    %cst_25 = arith.constant 1.000000e+00 : f32
    %38 = vector.broadcast %cst_25 : f32 to vector<32x2xf32>
    %39 = arith.addf %38, %37 : vector<32x2xf32>
    %40 = arith.divf %38, %39 : vector<32x2xf32>
    %41 = vector.extract_strided_slice %14 {offsets = [0, 0], sizes = [32, 256], strides = [1, 1]} : vector<32x512xf32> to vector<32x256xf32>
    %42 = vector.extract_strided_slice %40 {offsets = [0, 0], sizes = [32, 1], strides = [1, 1]} : vector<32x2xf32> to vector<32x1xf32>
    %43 = vector.broadcast %42 : vector<32x1xf32> to vector<32x256xf32>
    %44 = arith.mulf %41, %43 : vector<32x256xf32>
    %45 = vector.extract_strided_slice %0 {offsets = [0, 0], sizes = [32, 256], strides = [1, 1]} : vector<32x512xf32> to vector<32x256xf32>
    %46 = arith.addf %44, %45 : vector<32x256xf32>
    %c0_26 = arith.constant 0 : index
    %c0_27 = arith.constant 0 : index
    %47 = vector.load %arg10[%c0_26, %c0_27] : memref<32x512xf32, #tpu.memory_space<vmem>>, vector<32x256xf32>
    tpu.vector_store %arg10[%c0_26, %c0_27], %46 {strides = array<i32>} : memref<32x512xf32, #tpu.memory_space<vmem>>, vector<32x256xf32>,
    %48 = vector.extract_strided_slice %14 {offsets = [0, 256], sizes = [32, 256], strides = [1, 1]} : vector<32x512xf32> to vector<32x256xf32>
    %49 = vector.extract_strided_slice %40 {offsets = [0, 1], sizes = [32, 1], strides = [1, 1]} : vector<32x2xf32> to vector<32x1xf32>
    %50 = vector.broadcast %49 : vector<32x1xf32> to vector<32x256xf32>
    %51 = arith.mulf %48, %50 : vector<32x256xf32>
    %52 = vector.extract_strided_slice %0 {offsets = [0, 256], sizes = [32, 256], strides = [1, 1]} : vector<32x512xf32> to vector<32x256xf32>
    %53 = arith.addf %51, %52 : vector<32x256xf32>
    %c0_28 = arith.constant 0 : index
    %c256 = arith.constant 256 : index
    %54 = vector.load %arg10[%c0_28, %c256] : memref<32x512xf32, #tpu.memory_space<vmem>>, vector<32x256xf32>
    tpu.vector_store %arg10[%c0_28, %c256], %53 {strides = array<i32>} : memref<32x512xf32, #tpu.memory_space<vmem>>, vector<32x256xf32>,
    return
  }
  func.func @transform_0(%arg0: i32) -> (i32, i32) {
    %c0_i32 = arith.constant 0 : i32
    %c0_i32_0 = arith.constant 0 : i32
    return %c0_i32, %arg0 : i32, i32
  }
  func.func @transform_1(%arg0: i32) -> (i32, i32) {
    %c0_i32 = arith.constant 0 : i32
    %c0_i32_0 = arith.constant 0 : i32
    %c0_i32_1 = arith.constant 0 : i32
    return %c0_i32, %c0_i32_0 : i32, i32
  }
  func.func @transform_2(%arg0: i32) -> (i32, i32) {
    %c0_i32 = arith.constant 0 : i32
    %c0_i32_0 = arith.constant 0 : i32
    %c0_i32_1 = arith.constant 0 : i32
    return %c0_i32, %c0_i32_0 : i32, i32
  }
  func.func @transform_3(%arg0: i32) -> (i32, i32) {
    %c0_i32 = arith.constant 0 : i32
    %c0_i32_0 = arith.constant 0 : i32
    %c0_i32_1 = arith.constant 0 : i32
    return %c0_i32, %c0_i32_0 : i32, i32
  }
  func.func @transform_4(%arg0: i32) -> (i32, i32) {
    %c0_i32 = arith.constant 0 : i32
    %c0_i32_0 = arith.constant 0 : i32
    %c0_i32_1 = arith.constant 0 : i32
    return %c0_i32, %c0_i32_0 : i32, i32
  }
  func.func @transform_5(%arg0: i32) -> (i32, i32) {
    %c0_i32 = arith.constant 0 : i32
    %c0_i32_0 = arith.constant 0 : i32
    %c0_i32_1 = arith.constant 0 : i32
    return %c0_i32, %c0_i32_0 : i32, i32
  }
  func.func @transform_6(%arg0: i32) -> (i32, i32) {
    %c0_i32 = arith.constant 0 : i32
    %c0_i32_0 = arith.constant 0 : i32
    %c0_i32_1 = arith.constant 0 : i32
    return %c0_i32, %c0_i32_0 : i32, i32
  }
  func.func @transform_7(%arg0: i32) -> (i32, i32) {
    %c0_i32 = arith.constant 0 : i32
    %c0_i32_0 = arith.constant 0 : i32
    %c0_i32_1 = arith.constant 0 : i32
    return %c0_i32, %c0_i32_0 : i32, i32
  }
  func.func @transform_8(%arg0: i32) -> (i32, i32) {
    %c0_i32 = arith.constant 0 : i32
    %c0_i32_0 = arith.constant 0 : i32
    %c0_i32_1 = arith.constant 0 : i32
    return %c0_i32, %c0_i32_0 : i32, i32
  }
  func.func @transform_9(%arg0: i32) -> (i32, i32) {
    %c0_i32 = arith.constant 0 : i32
    %c0_i32_0 = arith.constant 0 : i32
    return %c0_i32, %arg0 : i32, i32
  }
}

</mosaic_0001>

<llo_original>
// kernel: tpu_custom_call.1
$region0: #{tpu_custom_call.1}
  #allocation0 [shape = 'u32[]', space=smem, size = 0x4, offset = 0x4, fixed_abs, tag = 'smem constant byte address 0x4 - core index']
  #allocation1 [shape = 'u32[144,128]{1,0:T(1,128)}', space=vmem, size = 0x12000, scoped, tag = 'internal scratch']
  %s0 = inlined_call_operand.vmem [shape: f32[32,512], index: 0, kind: input, shape index: {}]
  %s1 = inlined_call_operand.hbm [shape: bf16[32,32], index: 1, kind: input, shape index: {}]
  %s2 = inlined_call_operand.vmem [shape: f32[32,1], index: 2, kind: input, shape index: {}]
  %s3 = inlined_call_operand.hbm [shape: bf16[32,32], index: 3, kind: input, shape index: {}]
  %s4 = inlined_call_operand.vmem [shape: f32[32,1], index: 4, kind: input, shape index: {}]
  %s5 = inlined_call_operand.vmem [shape: f32[2,32], index: 5, kind: input, shape index: {}]
  %s6 = inlined_call_operand.vmem [shape: f32[2,1], index: 6, kind: input, shape index: {}]
  %s7 = inlined_call_operand.vmem [shape: f32[32,2], index: 7, kind: input, shape index: {}]
  %s8 = inlined_call_operand.vmem [shape: f32[32,1], index: 8, kind: input, shape index: {}]
  %s9 = inlined_call_operand.hbm [shape: f32[32,512], index: 9, kind: output, shape index: {}]
  %s10 = sld [smem:[#allocation0]]
  $region54: #{tpu_custom_call.1} parent=0
    _
  %s12 = ssub.s32 1, %s10
  %s13 = scalar_select 0, %s12, %s10
  $region1: #{tpu_custom_call.1} parent=0
    #allocation2 [shape = 'u8[8192]{0}', space=vmem, size = 0x2000, scoped, tag = 'input window, operand 1, single buffered']
    #allocation3 [shape = 's32[1]{0}', space=sflag, size = 0x4, scoped, tag = 'scoped memory for tpu_custom_call.1']
    #allocation4 [shape = 's32[1]{0}', space=sflag, size = 0x4, scoped, tag = 'scoped memory for tpu_custom_call.1']
    #allocation5 [shape = 'u8[8192]{0}', space=vmem, size = 0x2000, scoped, tag = 'input window, operand 3, single buffered']
    #allocation6 [shape = 's32[1]{0}', space=sflag, size = 0x4, scoped, tag = 'scoped memory for tpu_custom_call.1']
    #allocation7 [shape = 'u8[65536]{0}', space=vmem, size = 0x10000, scoped, tag = 'output window, operand 0, single buffered']
    %14 = vsyncpa [#allocation3], 0
    %15 = vsyncpa [#allocation6], 0
    %16 = vsyncpa [#allocation4], 0
    // Predicated region
    $region2: #{tpu_custom_call.1} parent=1 // pred_check
      _
    $region3: #{tpu_custom_call.1} parent=1 // pred_check_branch
      %18 = sbr.rel (0) target = $region5
    $region4: #{tpu_custom_call.1} parent=1 // pred_region
      _
    $region5: #{tpu_custom_call.1} parent=1 // pred_fallthru
      _
    // Predicated region
    $region6: #{tpu_custom_call.1} parent=1 // pred_check
      _
    $region7: #{tpu_custom_call.1} parent=1 // pred_check_branch
      %20 = sbr.rel (0) target = $region9
    $region8: #{tpu_custom_call.1} parent=1 // pred_region
      %s22 = ssub.s32 256, 256
      %23 = vsyncadd [#allocation3], %s22
      %s24 = sshll.u32 [#allocation2], 4
      %s25 = int_to_ptr.vmem [resolvable:$true] %s24
      %30 = dma.hbm_to_vmem [thread:$0]  %s1, 256, %s25, [#allocation3], 64, 64, 4
    $region9: #{tpu_custom_call.1} parent=1 // pred_fallthru
      _
    // Predicated region
    $region10: #{tpu_custom_call.1} parent=1 // pred_check
      _
    $region11: #{tpu_custom_call.1} parent=1 // pred_check_branch
      %32 = sbr.rel (0) target = $region13
    $region12: #{tpu_custom_call.1} parent=1 // pred_region
      _
    $region13: #{tpu_custom_call.1} parent=1 // pred_fallthru
      _
    // Predicated region
    $region14: #{tpu_custom_call.1} parent=1 // pred_check
      _
    $region15: #{tpu_custom_call.1} parent=1 // pred_check_branch
      %34 = sbr.rel (0) target = $region17
    $region16: #{tpu_custom_call.1} parent=1 // pred_region
      %s36 = ssub.s32 256, 256
      %37 = vsyncadd [#allocation6], %s36
      %s38 = sshll.u32 [#allocation5], 4
      %s39 = int_to_ptr.vmem [resolvable:$true] %s38
      %44 = dma.hbm_to_vmem [thread:$0]  %s3, 256, %s39, [#allocation6], 64, 64, 4
    $region17: #{tpu_custom_call.1} parent=1 // pred_fallthru
      _
    // Predicated region
    $region18: #{tpu_custom_call.1} parent=1 // pred_check
      _
    $region19: #{tpu_custom_call.1} parent=1 // pred_check_branch
      %46 = sbr.rel (0) target = $region21
    $region20: #{tpu_custom_call.1} parent=1 // pred_region
      _
    $region21: #{tpu_custom_call.1} parent=1 // pred_fallthru
      _
    // Predicated region
    $region22: #{tpu_custom_call.1} parent=1 // pred_check
      _
    $region23: #{tpu_custom_call.1} parent=1 // pred_check_branch
      %48 = sbr.rel (0) target = $region25
    $region24: #{tpu_custom_call.1} parent=1 // pred_region
      _
    $region25: #{tpu_custom_call.1} parent=1 // pred_fallthru
      _
    // Predicated region
    $region26: #{tpu_custom_call.1} parent=1 // pred_check
      _
    $region27: #{tpu_custom_call.1} parent=1 // pred_check_branch
      %50 = sbr.rel (0) target = $region29
    $region28: #{tpu_custom_call.1} parent=1 // pred_region
      _
    $region29: #{tpu_custom_call.1} parent=1 // pred_fallthru
      _
    // Predicated region
    $region30: #{tpu_custom_call.1} parent=1 // pred_check
      _
    $region31: #{tpu_custom_call.1} parent=1 // pred_check_branch
      %52 = sbr.rel (0) target = $region33
    $region32: #{tpu_custom_call.1} parent=1 // pred_region
      _
    $region33: #{tpu_custom_call.1} parent=1 // pred_fallthru
      _
    // Predicated region
    $region34: #{tpu_custom_call.1} parent=1 // pred_check
      _
    $region35: #{tpu_custom_call.1} parent=1 // pred_check_branch
      %54 = sbr.rel (0) target = $region37
    $region36: #{tpu_custom_call.1} parent=1 // pred_region
      _
    $region37: #{tpu_custom_call.1} parent=1 // pred_fallthru
      _
    // Predicated region
    $region38: #{tpu_custom_call.1} parent=1 // pred_check
      _
    $region39: #{tpu_custom_call.1} parent=1 // pred_check_branch
      %56 = sbr.rel (0) target = $region41
    $region40: #{tpu_custom_call.1} parent=1 // pred_region
      %57 = dma.done [#allocation3], 256
    $region41: #{tpu_custom_call.1} parent=1 // pred_fallthru
      _
    // Predicated region
    $region42: #{tpu_custom_call.1} parent=1 // pred_check
      _
    $region43: #{tpu_custom_call.1} parent=1 // pred_check_branch
      %59 = sbr.rel (0) target = $region45
    $region44: #{tpu_custom_call.1} parent=1 // pred_region
      %60 = dma.done [#allocation6], 256
    $region45: #{tpu_custom_call.1} parent=1 // pred_fallthru
      _
    %v62 = vld [vmem:[%s0] sm:$0xff]
    %v63 = vld [vmem:[%s0 + $0x8] sm:$0xff]
    %v64 = vld [vmem:[%s0 + $0x10] sm:$0xff]
    %v65 = vld [vmem:[%s0 + $0x18] sm:$0xff]
    %v66 = vld [vmem:[%s0 + $0x20] sm:$0xff]
    %v67 = vld [vmem:[%s0 + $0x28] sm:$0xff]
    %v68 = vld [vmem:[%s0 + $0x30] sm:$0xff]
    %v69 = vld [vmem:[%s0 + $0x38] sm:$0xff]
    %v70 = vld [vmem:[%s0 + $0x40] sm:$0xff]
    %v71 = vld [vmem:[%s0 + $0x48] sm:$0xff]
    %v72 = vld [vmem:[%s0 + $0x50] sm:$0xff]
    %v73 = vld [vmem:[%s0 + $0x58] sm:$0xff]
    %v74 = vld [vmem:[%s0 + $0x60] sm:$0xff]
    %v75 = vld [vmem:[%s0 + $0x68] sm:$0xff]
    %v76 = vld [vmem:[%s0 + $0x70] sm:$0xff]
    %v77 = vld [vmem:[%s0 + $0x78] sm:$0xff]
    %v78 = vld [vmem:[#allocation2] sm:$0xf]
    %v79 = vld [vmem:[#allocation2 + $0x4] sm:$0xf]
    %v80 = vld [vmem:[#allocation2 + $0x8] sm:$0xf]
    %v81 = vld [vmem:[#allocation2 + $0xc] sm:$0xf]
    %v82 = vpack.c.bf16 %v66, %v62
    %v83 = vpack.c.bf16 %v67, %v63
    %v84 = vpack.c.bf16 %v68, %v64
    %v85 = vpack.c.bf16 %v69, %v65
    %v86 = vpack.c.bf16 %v74, %v70
    %v87 = vpack.c.bf16 %v75, %v71
    %v88 = vpack.c.bf16 %v76, %v72
    %v89 = vpack.c.bf16 %v77, %v73
    %v90 = vld [vmem:[%s2] sm:$0xff]
    %v91 = vld [vmem:[%s2 + $0x8] sm:$0xff]
    %v92 = vld [vmem:[%s2 + $0x10] sm:$0xff]
    %v93 = vld [vmem:[%s2 + $0x18] sm:$0xff]
    %95 = vset.pattern.permute.xlu0 0
    %96 = vperm.xlu0 %95, %v90
    %v97 = vpop.permute.xlu0 %96
    %100 = vset.pattern.permute.xlu0 0
    %101 = vperm.xlu0 %100, %v91
    %v102 = vpop.permute.xlu0 %101
    %105 = vset.pattern.permute.xlu0 0
    %106 = vperm.xlu0 %105, %v92
    %v107 = vpop.permute.xlu0 %106
    %110 = vset.pattern.permute.xlu0 0
    %111 = vperm.xlu0 %110, %v93
    %v112 = vpop.permute.xlu0 %111
    %v118 = vunpack.c.l.b16 %v78
    %v119 = vunpack.c.l.b16 %v79
    %v120 = vunpack.c.l.b16 %v80
    %v121 = vunpack.c.l.b16 %v81
    %v122 = vpack.c.b16 %v119, %v118
    %v123 = vpack.c.b16 %v121, %v120
    %vm124 = vcmask 261120
    %v126 = vsel %vm124, %v122, 0
    %v129 = vsel %vm124, %v123, 0
    %131 = vmatprep.subr.bf16.mxu0 0
    %132 = vmatpush1.bf16.msra.mxu0 0
    %133 = vmatprep.subr.bf16.mxu0 0
    %134 = vmatpush1.bf16.msra.mxu0 0
    %135 = vmatprep.subr.bf16.mxu0 0
    %136 = vmatpush1.bf16.msra.mxu0 0
    %137 = vmatprep.subr.bf16.mxu0 0
    %138 = vmatpush1.bf16.msra.mxu0 0
    %139 = vmatprep.subr.bf16.mxu0 0
    %140 = vmatpush1.bf16.msra.mxu0 0
    %141 = vmatprep.subr.bf16.mxu0 0
    %142 = vmatpush1.bf16.msra.mxu0 0
    %143 = vmatprep.subr.bf16.mxu0 %v87
    %144 = vmatpush1.bf16.msra.mxu0 %v86
    %145 = vmatprep.subr.bf16.mxu0 %v83
    %146 = vmatpush1.bf16.msra.mxu0 %v82
    %147 = vmatprep.subr.bf16.mxu0 0
    %148 = vmatpush2.bf16.msra.mxu0 0
    %149 = vmatprep.subr.bf16.mxu0 0
    %150 = vmatpush2.bf16.msra.mxu0 0
    %151 = vmatprep.subr.bf16.mxu0 0
    %152 = vmatpush2.bf16.msra.mxu0 0
    %153 = vmatprep.subr.bf16.mxu0 0
    %154 = vmatpush2.bf16.msra.mxu0 0
    %155 = vmatprep.subr.bf16.mxu0 0
    %156 = vmatpush2.bf16.msra.mxu0 0
    %157 = vmatprep.subr.bf16.mxu0 0
    %158 = vmatpush2.bf16.msra.mxu0 0
    %159 = vmatprep.subr.bf16.mxu0 0
    %160 = vmatpush2.bf16.msra.mxu0 0
    %161 = vmatprep.subr.bf16.mxu0 0
    %162 = vmatpush2.bf16.msra.mxu0 0
    %163 = vmatprep.mubr.bf16.mxu0 0
    %164 = vmatmul.mubr.bf16.gmra.mxu0 %v126
    %v165 = vpop.f32.mrf.mxu0
    %v166 = vadd.f32 %v97, %v165
    %v167 = vpop.f32.mrf.mxu0
    %v168 = vadd.f32 %v97, %v167
    %v169 = vpop.f32.mrf.mxu0
    %v170 = vadd.f32 %v102, %v169
    %v171 = vpop.f32.mrf.mxu0
    %v172 = vadd.f32 %v102, %v171
    %173 = vmatprep.mubr.bf16.mxu0 0
    %174 = vmatmul.mubr.bf16.gmra.mxu0 %v129
    %v175 = vpop.f32.mrf.mxu0
    %v176 = vadd.f32 %v107, %v175
    %v177 = vpop.f32.mrf.mxu0
    %v178 = vadd.f32 %v107, %v177
    %v179 = vpop.f32.mrf.mxu0
    %v180 = vadd.f32 %v112, %v179
    %v181 = vpop.f32.mrf.mxu0
    %v182 = vadd.f32 %v112, %v181
    %183 = vdwg.mxu0
    %184 = vmatprep.subr.bf16.mxu0 0
    %185 = vmatpush1.bf16.msra.mxu0 0
    %186 = vmatprep.subr.bf16.mxu0 0
    %187 = vmatpush1.bf16.msra.mxu0 0
    %188 = vmatprep.subr.bf16.mxu0 0
    %189 = vmatpush1.bf16.msra.mxu0 0
    %190 = vmatprep.subr.bf16.mxu0 0
    %191 = vmatpush1.bf16.msra.mxu0 0
    %192 = vmatprep.subr.bf16.mxu0 0
    %193 = vmatpush1.bf16.msra.mxu0 0
    %194 = vmatprep.subr.bf16.mxu0 0
    %195 = vmatpush1.bf16.msra.mxu0 0
    %196 = vmatprep.subr.bf16.mxu0 %v89
    %197 = vmatpush1.bf16.msra.mxu0 %v88
    %198 = vmatprep.subr.bf16.mxu0 %v85
    %199 = vmatpush1.bf16.msra.mxu0 %v84
    %200 = vmatprep.subr.bf16.mxu0 0
    %201 = vmatpush2.bf16.msra.mxu0 0
    %202 = vmatprep.subr.bf16.mxu0 0
    %203 = vmatpush2.bf16.msra.mxu0 0
    %204 = vmatprep.subr.bf16.mxu0 0
    %205 = vmatpush2.bf16.msra.mxu0 0
    %206 = vmatprep.subr.bf16.mxu0 0
    %207 = vmatpush2.bf16.msra.mxu0 0
    %208 = vmatprep.subr.bf16.mxu0 0
    %209 = vmatpush2.bf16.msra.mxu0 0
    %210 = vmatprep.subr.bf16.mxu0 0
    %211 = vmatpush2.bf16.msra.mxu0 0
    %212 = vmatprep.subr.bf16.mxu0 0
    %213 = vmatpush2.bf16.msra.mxu0 0
    %214 = vmatprep.subr.bf16.mxu0 0
    %215 = vmatpush2.bf16.msra.mxu0 0
    %216 = vmatprep.mubr.bf16.mxu0 0
    %217 = vmatmul.mubr.bf16.gmra.mxu0 %v126
    %v218 = vpop.f32.mrf.mxu0
    %v219 = vadd.f32 %v97, %v218
    %v220 = vpop.f32.mrf.mxu0
    %v221 = vadd.f32 %v97, %v220
    %v222 = vpop.f32.mrf.mxu0
    %v223 = vadd.f32 %v102, %v222
    %v224 = vpop.f32.mrf.mxu0
    %v225 = vadd.f32 %v102, %v224
    %226 = vmatprep.mubr.bf16.mxu0 0
    %227 = vmatmul.mubr.bf16.gmra.mxu0 %v129
    %v228 = vpop.f32.mrf.mxu0
    %v229 = vadd.f32 %v107, %v228
    %v230 = vpop.f32.mrf.mxu0
    %v231 = vadd.f32 %v107, %v230
    %v232 = vpop.f32.mrf.mxu0
    %v233 = vadd.f32 %v112, %v232
    %v234 = vpop.f32.mrf.mxu0
    %v235 = vadd.f32 %v112, %v234
    %236 = vdwg.mxu0
    %v237 = vmax.f32 %v166, 0.0
    %v238 = vmax.f32 %v168, 0.0
    %v239 = vmax.f32 %v219, 0.0
    %v240 = vmax.f32 %v221, 0.0
    %v241 = vmax.f32 %v170, 0.0
    %v242 = vmax.f32 %v172, 0.0
    %v243 = vmax.f32 %v223, 0.0
    %v244 = vmax.f32 %v225, 0.0
    %v245 = vmax.f32 %v176, 0.0
    %v246 = vmax.f32 %v178, 0.0
    %v247 = vmax.f32 %v229, 0.0
    %v248 = vmax.f32 %v231, 0.0
    %v249 = vmax.f32 %v180, 0.0
    %v250 = vmax.f32 %v182, 0.0
    %v251 = vmax.f32 %v233, 0.0
    %v252 = vmax.f32 %v235, 0.0
    %v253 = vld [vmem:[#allocation5] sm:$0xf]
    %v254 = vld [vmem:[#allocation5 + $0x4] sm:$0xf]
    %v255 = vld [vmem:[#allocation5 + $0x8] sm:$0xf]
    %v256 = vld [vmem:[#allocation5 + $0xc] sm:$0xf]
    %v257 = vpack.c.bf16 %v241, %v237
    %v258 = vpack.c.bf16 %v242, %v238
    %v259 = vpack.c.bf16 %v243, %v239
    %v260 = vpack.c.bf16 %v244, %v240
    %v261 = vpack.c.bf16 %v249, %v245
    %v262 = vpack.c.bf16 %v250, %v246
    %v263 = vpack.c.bf16 %v251, %v247
    %v264 = vpack.c.bf16 %v252, %v248
    %v265 = vld [vmem:[%s4] sm:$0xff]
    %v266 = vld [vmem:[%s4 + $0x8] sm:$0xff]
    %v267 = vld [vmem:[%s4 + $0x10] sm:$0xff]
    %v268 = vld [vmem:[%s4 + $0x18] sm:$0xff]
    %270 = vset.pattern.permute.xlu0 0
    %271 = vperm.xlu0 %270, %v265
    %v272 = vpop.permute.xlu0 %271
    %275 = vset.pattern.permute.xlu0 0
    %276 = vperm.xlu0 %275, %v266
    %v277 = vpop.permute.xlu0 %276
    %280 = vset.pattern.permute.xlu0 0
    %281 = vperm.xlu0 %280, %v267
    %v282 = vpop.permute.xlu0 %281
    %285 = vset.pattern.permute.xlu0 0
    %286 = vperm.xlu0 %285, %v268
    %v287 = vpop.permute.xlu0 %286
    %v293 = vunpack.c.l.b16 %v253
    %v294 = vunpack.c.l.b16 %v254
    %v295 = vunpack.c.l.b16 %v255
    %v296 = vunpack.c.l.b16 %v256
    %v297 = vpack.c.b16 %v294, %v293
    %v298 = vpack.c.b16 %v296, %v295
    %v300 = vsel %vm124, %v297, 0
    %v303 = vsel %vm124, %v298, 0
    %305 = vmatprep.subr.bf16.mxu0 0
    %306 = vmatpush1.bf16.msra.mxu0 0
    %307 = vmatprep.subr.bf16.mxu0 0
    %308 = vmatpush1.bf16.msra.mxu0 0
    %309 = vmatprep.subr.bf16.mxu0 0
    %310 = vmatpush1.bf16.msra.mxu0 0
    %311 = vmatprep.subr.bf16.mxu0 0
    %312 = vmatpush1.bf16.msra.mxu0 0
    %313 = vmatprep.subr.bf16.mxu0 0
    %314 = vmatpush1.bf16.msra.mxu0 0
    %315 = vmatprep.subr.bf16.mxu0 0
    %316 = vmatpush1.bf16.msra.mxu0 0
    %317 = vmatprep.subr.bf16.mxu0 %v262
    %318 = vmatpush1.bf16.msra.mxu0 %v261
    %319 = vmatprep.subr.bf16.mxu0 %v258
    %320 = vmatpush1.bf16.msra.mxu0 %v257
    %321 = vmatprep.subr.bf16.mxu0 0
    %322 = vmatpush2.bf16.msra.mxu0 0
    %323 = vmatprep.subr.bf16.mxu0 0
    %324 = vmatpush2.bf16.msra.mxu0 0
    %325 = vmatprep.subr.bf16.mxu0 0
    %326 = vmatpush2.bf16.msra.mxu0 0
    %327 = vmatprep.subr.bf16.mxu0 0
    %328 = vmatpush2.bf16.msra.mxu0 0
    %329 = vmatprep.subr.bf16.mxu0 0
    %330 = vmatpush2.bf16.msra.mxu0 0
    %331 = vmatprep.subr.bf16.mxu0 0
    %332 = vmatpush2.bf16.msra.mxu0 0
    %333 = vmatprep.subr.bf16.mxu0 0
    %334 = vmatpush2.bf16.msra.mxu0 0
    %335 = vmatprep.subr.bf16.mxu0 0
    %336 = vmatpush2.bf16.msra.mxu0 0
    %337 = vmatprep.mubr.bf16.mxu0 0
    %338 = vmatmul.mubr.bf16.gmra.mxu0 %v300
    %v339 = vpop.f32.mrf.mxu0
    %v340 = vadd.f32 %v272, %v339
    %v341 = vpop.f32.mrf.mxu0
    %v342 = vadd.f32 %v272, %v341
    %v343 = vpop.f32.mrf.mxu0
    %v344 = vadd.f32 %v277, %v343
    %v345 = vpop.f32.mrf.mxu0
    %v346 = vadd.f32 %v277, %v345
    %347 = vmatprep.mubr.bf16.mxu0 0
    %348 = vmatmul.mubr.bf16.gmra.mxu0 %v303
    %v349 = vpop.f32.mrf.mxu0
    %v350 = vadd.f32 %v282, %v349
    %v351 = vpop.f32.mrf.mxu0
    %v352 = vadd.f32 %v282, %v351
    %v353 = vpop.f32.mrf.mxu0
    %v354 = vadd.f32 %v287, %v353
    %v355 = vpop.f32.mrf.mxu0
    %v356 = vadd.f32 %v287, %v355
    %357 = vdwg.mxu0
    %358 = vmatprep.subr.bf16.mxu0 0
    %359 = vmatpush1.bf16.msra.mxu0 0
    %360 = vmatprep.subr.bf16.mxu0 0
    %361 = vmatpush1.bf16.msra.mxu0 0
    %362 = vmatprep.subr.bf16.mxu0 0
    %363 = vmatpush1.bf16.msra.mxu0 0
    %364 = vmatprep.subr.bf16.mxu0 0
    %365 = vmatpush1.bf16.msra.mxu0 0
    %366 = vmatprep.subr.bf16.mxu0 0
    %367 = vmatpush1.bf16.msra.mxu0 0
    %368 = vmatprep.subr.bf16.mxu0 0
    %369 = vmatpush1.bf16.msra.mxu0 0
    %370 = vmatprep.subr.bf16.mxu0 %v264
    %371 = vmatpush1.bf16.msra.mxu0 %v263
    %372 = vmatprep.subr.bf16.mxu0 %v260
    %373 = vmatpush1.bf16.msra.mxu0 %v259
    %374 = vmatprep.subr.bf16.mxu0 0
    %375 = vmatpush2.bf16.msra.mxu0 0
    %376 = vmatprep.subr.bf16.mxu0 0
    %377 = vmatpush2.bf16.msra.mxu0 0
    %378 = vmatprep.subr.bf16.mxu0 0
    %379 = vmatpush2.bf16.msra.mxu0 0
    %380 = vmatprep.subr.bf16.mxu0 0
    %381 = vmatpush2.bf16.msra.mxu0 0
    %382 = vmatprep.subr.bf16.mxu0 0
    %383 = vmatpush2.bf16.msra.mxu0 0
    %384 = vmatprep.subr.bf16.mxu0 0
    %385 = vmatpush2.bf16.msra.mxu0 0
    %386 = vmatprep.subr.bf16.mxu0 0
    %387 = vmatpush2.bf16.msra.mxu0 0
    %388 = vmatprep.subr.bf16.mxu0 0
    %389 = vmatpush2.bf16.msra.mxu0 0
    %390 = vmatprep.mubr.bf16.mxu0 0
    %391 = vmatmul.mubr.bf16.gmra.mxu0 %v300
    %v392 = vpop.f32.mrf.mxu0
    %v393 = vadd.f32 %v272, %v392
    %v394 = vpop.f32.mrf.mxu0
    %v395 = vadd.f32 %v272, %v394
    %v396 = vpop.f32.mrf.mxu0
    %v397 = vadd.f32 %v277, %v396
    %v398 = vpop.f32.mrf.mxu0
    %v399 = vadd.f32 %v277, %v398
    %400 = vmatprep.mubr.bf16.mxu0 0
    %401 = vmatmul.mubr.bf16.gmra.mxu0 %v303
    %v402 = vpop.f32.mrf.mxu0
    %v403 = vadd.f32 %v282, %v402
    %v404 = vpop.f32.mrf.mxu0
    %v405 = vadd.f32 %v282, %v404
    %v406 = vpop.f32.mrf.mxu0
    %v407 = vadd.f32 %v287, %v406
    %v408 = vpop.f32.mrf.mxu0
    %v409 = vadd.f32 %v287, %v408
    %410 = vdwg.mxu0
    %v411 = vadd.f32 %v340, %v342
    %412 = vadd.xlane.f32.xlu0 %v411
    %v413 = vpop.xlane.xlu0 %412
    %v414 = vadd.f32 %v344, %v346
    %415 = vadd.xlane.f32.xlu0 %v414
    %v416 = vpop.xlane.xlu0 %415
    %v417 = vadd.f32 %v350, %v352
    %418 = vadd.xlane.f32.xlu0 %v417
    %v419 = vpop.xlane.xlu0 %418
    %v420 = vadd.f32 %v354, %v356
    %421 = vadd.xlane.f32.xlu0 %v420
    %v422 = vpop.xlane.xlu0 %421
    %v423 = vadd.f32 %v393, %v395
    %424 = vadd.xlane.f32.xlu0 %v423
    %v425 = vpop.xlane.xlu0 %424
    %v426 = vadd.f32 %v397, %v399
    %427 = vadd.xlane.f32.xlu0 %v426
    %v428 = vpop.xlane.xlu0 %427
    %v429 = vadd.f32 %v403, %v405
    %430 = vadd.xlane.f32.xlu0 %v429
    %v431 = vpop.xlane.xlu0 %430
    %v432 = vadd.f32 %v407, %v409
    %433 = vadd.xlane.f32.xlu0 %v432
    %v434 = vpop.xlane.xlu0 %433
    %vm435 = vcmask 7168
    %v436 = vsel %vm435, %v413, %v425
    %v437 = vsel %vm435, %v416, %v428
    %v438 = vsel %vm435, %v419, %v431
    %v439 = vsel %vm435, %v422, %v434
    %v440 = vmul.f32 %v436, 0.00390625
    %v441 = vmul.f32 %v437, 0.00390625
    %v442 = vmul.f32 %v438, 0.00390625
    %v443 = vmul.f32 %v439, 0.00390625
    %v444 = vld [vmem:[%s5] sm:$0x3]
    %v445 = vld [vmem:[%s6] sm:$0x3]
    %447 = vset.pattern.permute.xlu0 0
    %448 = vperm.xlu0 %447, %v445
    %v449 = vpop.permute.xlu0 %448
    %v452 = vsel %vm124, %v444, 0
    %454 = vmatprep.subr.mxu0 0.0
    %455 = vmatpush1.msra.mxu0 0.0
    %456 = vmatprep.subr.mxu0 0.0
    %457 = vmatpush1.msra.mxu0 0.0
    %458 = vmatprep.subr.mxu0 0.0
    %459 = vmatpush1.msra.mxu0 0.0
    %460 = vmatprep.subr.mxu0 0.0
    %461 = vmatpush1.msra.mxu0 0.0
    %462 = vmatprep.subr.mxu0 0.0
    %463 = vmatpush1.msra.mxu0 0.0
    %464 = vmatprep.subr.mxu0 0.0
    %465 = vmatpush1.msra.mxu0 0.0
    %466 = vmatprep.subr.mxu0 0.0
    %467 = vmatpush1.msra.mxu0 0.0
    %468 = vmatprep.subr.mxu0 0.0
    %469 = vmatpush1.msra.mxu0 0.0
    %470 = vmatprep.subr.mxu0 0.0
    %471 = vmatpush1.msra.mxu0 0.0
    %472 = vmatprep.subr.mxu0 0.0
    %473 = vmatpush1.msra.mxu0 0.0
    %474 = vmatprep.subr.mxu0 0.0
    %475 = vmatpush1.msra.mxu0 0.0
    %476 = vmatprep.subr.mxu0 0.0
    %477 = vmatpush1.msra.mxu0 0.0
    %478 = vmatprep.subr.mxu0 0.0
    %479 = vmatpush1.msra.mxu0 %v443
    %480 = vmatprep.subr.mxu0 0.0
    %481 = vmatpush1.msra.mxu0 %v442
    %482 = vmatprep.subr.mxu0 0.0
    %483 = vmatpush1.msra.mxu0 %v441
    %484 = vmatprep.subr.mxu0 0.0
    %485 = vmatpush1.msra.mxu0 %v440
    %486 = vmatprep.subr.mxu0 0.0
    %487 = vmatpush2.msra.mxu0 0.0
    %488 = vmatprep.subr.mxu0 0.0
    %489 = vmatpush2.msra.mxu0 0.0
    %490 = vmatprep.subr.mxu0 0.0
    %491 = vmatpush2.msra.mxu0 0.0
    %492 = vmatprep.subr.mxu0 0.0
    %493 = vmatpush2.msra.mxu0 0.0
    %494 = vmatprep.subr.mxu0 0.0
    %495 = vmatpush2.msra.mxu0 0.0
    %496 = vmatprep.subr.mxu0 0.0
    %497 = vmatpush2.msra.mxu0 0.0
    %498 = vmatprep.subr.mxu0 0.0
    %499 = vmatpush2.msra.mxu0 0.0
    %500 = vmatprep.subr.mxu0 0.0
    %501 = vmatpush2.msra.mxu0 0.0
    %502 = vmatprep.subr.mxu0 0.0
    %503 = vmatpush2.msra.mxu0 0.0
    %504 = vmatprep.subr.mxu0 0.0
    %505 = vmatpush2.msra.mxu0 0.0
    %506 = vmatprep.subr.mxu0 0.0
    %507 = vmatpush2.msra.mxu0 0.0
    %508 = vmatprep.subr.mxu0 0.0
    %509 = vmatpush2.msra.mxu0 0.0
    %510 = vmatprep.subr.mxu0 0.0
    %511 = vmatpush2.msra.mxu0 0.0
    %512 = vmatprep.subr.mxu0 0.0
    %513 = vmatpush2.msra.mxu0 0.0
    %514 = vmatprep.subr.mxu0 0.0
    %515 = vmatpush2.msra.mxu0 0.0
    %516 = vmatprep.subr.mxu0 0.0
    %517 = vmatpush2.msra.mxu0 0.0
    %518 = vmatprep.mubr.f32.mxu0 0.0
    %519 = vmatmul.mubr.f32.gmra.mxu0 %v452
    %v520 = vpop.f32.mrf.mxu0
    %v521 = vadd.f32 %v449, %v520
    %v522 = vpop.f32.mrf.mxu0
    %523 = vdwg.mxu0
    %v524 = vmax.f32 %v521, 0.0
    %v525 = vld [vmem:[%s7] sm:$0xff]
    %v526 = vld [vmem:[%s7 + $0x8] sm:$0xff]
    %v527 = vld [vmem:[%s7 + $0x10] sm:$0xff]
    %v528 = vld [vmem:[%s7 + $0x18] sm:$0xff]
    %v529 = vld [vmem:[%s8] sm:$0xff]
    %v530 = vld [vmem:[%s8 + $0x8] sm:$0xff]
    %v531 = vld [vmem:[%s8 + $0x10] sm:$0xff]
    %v532 = vld [vmem:[%s8 + $0x18] sm:$0xff]
    %534 = vset.pattern.permute.xlu0 0
    %535 = vperm.xlu0 %534, %v529
    %v536 = vpop.permute.xlu0 %535
    %539 = vset.pattern.permute.xlu0 0
    %540 = vperm.xlu0 %539, %v530
    %v541 = vpop.permute.xlu0 %540
    %544 = vset.pattern.permute.xlu0 0
    %545 = vperm.xlu0 %544, %v531
    %v546 = vpop.permute.xlu0 %545
    %549 = vset.pattern.permute.xlu0 0
    %550 = vperm.xlu0 %549, %v532
    %v551 = vpop.permute.xlu0 %550
    %vm553 = vcmask 15360
    %v555 = vsel %vm553, %v525, 0
    %v558 = vsel %vm553, %v526, 0
    %v561 = vsel %vm553, %v527, 0
    %v564 = vsel %vm553, %v528, 0
    %vm566 = vcmask 1041408
    %v568 = vsel %vm566, %v524, 0
    %570 = vmatprep.subr.mxu0 0.0
    %571 = vmatpush1.msra.mxu0 0.0
    %572 = vmatprep.subr.mxu0 0.0
    %573 = vmatpush1.msra.mxu0 0.0
    %574 = vmatprep.subr.mxu0 0.0
    %575 = vmatpush1.msra.mxu0 0.0
    %576 = vmatprep.subr.mxu0 0.0
    %577 = vmatpush1.msra.mxu0 0.0
    %578 = vmatprep.subr.mxu0 0.0
    %579 = vmatpush1.msra.mxu0 0.0
    %580 = vmatprep.subr.mxu0 0.0
    %581 = vmatpush1.msra.mxu0 0.0
    %582 = vmatprep.subr.mxu0 0.0
    %583 = vmatpush1.msra.mxu0 0.0
    %584 = vmatprep.subr.mxu0 0.0
    %585 = vmatpush1.msra.mxu0 0.0
    %586 = vmatprep.subr.mxu0 0.0
    %587 = vmatpush1.msra.mxu0 0.0
    %588 = vmatprep.subr.mxu0 0.0
    %589 = vmatpush1.msra.mxu0 0.0
    %590 = vmatprep.subr.mxu0 0.0
    %591 = vmatpush1.msra.mxu0 0.0
    %592 = vmatprep.subr.mxu0 0.0
    %593 = vmatpush1.msra.mxu0 0.0
    %594 = vmatprep.subr.mxu0 0.0
    %595 = vmatpush1.msra.mxu0 0.0
    %596 = vmatprep.subr.mxu0 0.0
    %597 = vmatpush1.msra.mxu0 0.0
    %598 = vmatprep.subr.mxu0 0.0
    %599 = vmatpush1.msra.mxu0 0.0
    %600 = vmatprep.subr.mxu0 0.0
    %601 = vmatpush1.msra.mxu0 %v568
    %602 = vmatprep.subr.mxu0 0.0
    %603 = vmatpush2.msra.mxu0 0.0
    %604 = vmatprep.subr.mxu0 0.0
    %605 = vmatpush2.msra.mxu0 0.0
    %606 = vmatprep.subr.mxu0 0.0
    %607 = vmatpush2.msra.mxu0 0.0
    %608 = vmatprep.subr.mxu0 0.0
    %609 = vmatpush2.msra.mxu0 0.0
    %610 = vmatprep.subr.mxu0 0.0
    %611 = vmatpush2.msra.mxu0 0.0
    %612 = vmatprep.subr.mxu0 0.0
    %613 = vmatpush2.msra.mxu0 0.0
    %614 = vmatprep.subr.mxu0 0.0
    %615 = vmatpush2.msra.mxu0 0.0
    %616 = vmatprep.subr.mxu0 0.0
    %617 = vmatpush2.msra.mxu0 0.0
    %618 = vmatprep.subr.mxu0 0.0
    %619 = vmatpush2.msra.mxu0 0.0
    %620 = vmatprep.subr.mxu0 0.0
    %621 = vmatpush2.msra.mxu0 0.0
    %622 = vmatprep.subr.mxu0 0.0
    %623 = vmatpush2.msra.mxu0 0.0
    %624 = vmatprep.subr.mxu0 0.0
    %625 = vmatpush2.msra.mxu0 0.0
    %626 = vmatprep.subr.mxu0 0.0
    %627 = vmatpush2.msra.mxu0 0.0
    %628 = vmatprep.subr.mxu0 0.0
    %629 = vmatpush2.msra.mxu0 0.0
    %630 = vmatprep.subr.mxu0 0.0
    %631 = vmatpush2.msra.mxu0 0.0
    %632 = vmatprep.subr.mxu0 0.0
    %633 = vmatpush2.msra.mxu0 0.0
    %634 = vmatprep.mubr.f32.mxu0 0.0
    %635 = vmatmul.mubr.f32.gmra.mxu0 %v555
    %v636 = vpop.f32.mrf.mxu0
    %v637 = vadd.f32 %v536, %v636
    %v638 = vpop.f32.mrf.mxu0
    %639 = vmatprep.mubr.f32.mxu0 0.0
    %640 = vmatmul.mubr.f32.gmra.mxu0 %v558
    %v641 = vpop.f32.mrf.mxu0
    %v642 = vadd.f32 %v541, %v641
    %v643 = vpop.f32.mrf.mxu0
    %644 = vmatprep.mubr.f32.mxu0 0.0
    %645 = vmatmul.mubr.f32.gmra.mxu0 %v561
    %v646 = vpop.f32.mrf.mxu0
    %v647 = vadd.f32 %v546, %v646
    %v648 = vpop.f32.mrf.mxu0
    %649 = vmatprep.mubr.f32.mxu0 0.0
    %650 = vmatmul.mubr.f32.gmra.mxu0 %v564
    %v651 = vpop.f32.mrf.mxu0
    %v652 = vadd.f32 %v551, %v651
    %v653 = vpop.f32.mrf.mxu0
    %654 = vdwg.mxu0
    %v655 = vxor.u32 %v637, 2147483648
    %v656 = vxor.u32 %v642, 2147483648
    %v657 = vxor.u32 %v647, 2147483648
    %v658 = vxor.u32 %v652, 2147483648
    %v659 = vmul.f32 %v655, 1.442695
    %v660 = vpow.pop %v659
    %v661 = vmul.f32 %v656, 1.442695
    %v662 = vpow.pop %v661
    %v663 = vmul.f32 %v657, 1.442695
    %v664 = vpow.pop %v663
    %v665 = vmul.f32 %v658, 1.442695
    %v666 = vpow.pop %v665
    %v667 = vadd.f32 %v660, 1.0
    %v668 = vadd.f32 %v662, 1.0
    %v669 = vadd.f32 %v664, 1.0
    %v670 = vadd.f32 %v666, 1.0
    %v671 = vrcp.pop %v667
    %v672 = vmul.f32 1.0, %v671
    %v673 = vrcp.pop %v668
    %v674 = vmul.f32 1.0, %v673
    %v675 = vrcp.pop %v669
    %v676 = vmul.f32 1.0, %v675
    %v677 = vrcp.pop %v670
    %v678 = vmul.f32 1.0, %v677
    %680 = vset.pattern.permute.xlu0 0
    %681 = vperm.xlu0 %680, %v672
    %v682 = vpop.permute.xlu0 %681
    %685 = vset.pattern.permute.xlu0 0
    %686 = vperm.xlu0 %685, %v674
    %v687 = vpop.permute.xlu0 %686
    %690 = vset.pattern.permute.xlu0 0
    %691 = vperm.xlu0 %690, %v676
    %v692 = vpop.permute.xlu0 %691
    %695 = vset.pattern.permute.xlu0 0
    %696 = vperm.xlu0 %695, %v678
    %v697 = vpop.permute.xlu0 %696
    %v699 = vmul.f32 %v340, %v682
    %v700 = vmul.f32 %v342, %v682
    %v701 = vmul.f32 %v344, %v687
    %v702 = vmul.f32 %v346, %v687
    %v703 = vmul.f32 %v350, %v692
    %v704 = vmul.f32 %v352, %v692
    %v705 = vmul.f32 %v354, %v697
    %v706 = vmul.f32 %v356, %v697
    %v707 = vadd.f32 %v699, %v62
    %v708 = vadd.f32 %v700, %v63
    %v709 = vadd.f32 %v701, %v66
    %v710 = vadd.f32 %v702, %v67
    %v711 = vadd.f32 %v703, %v70
    %v712 = vadd.f32 %v704, %v71
    %v713 = vadd.f32 %v705, %v74
    %v714 = vadd.f32 %v706, %v75
    %715 = vst [vmem:[#allocation7] sm:$0xff] %v707
    %716 = vst [vmem:[#allocation7 + $0x8] sm:$0xff] %v708
    %717 = vst [vmem:[#allocation7 + $0x20] sm:$0xff] %v709
    %718 = vst [vmem:[#allocation7 + $0x28] sm:$0xff] %v710
    %719 = vst [vmem:[#allocation7 + $0x40] sm:$0xff] %v711
    %720 = vst [vmem:[#allocation7 + $0x48] sm:$0xff] %v712
    %721 = vst [vmem:[#allocation7 + $0x60] sm:$0xff] %v713
    %722 = vst [vmem:[#allocation7 + $0x68] sm:$0xff] %v714
    %723 = vset.pattern.permute.xlu0 1
    %724 = vperm.xlu0 %723, %v672
    %v725 = vpop.permute.xlu0 %724
    %727 = vset.pattern.permute.xlu0 1
    %728 = vperm.xlu0 %727, %v674
    %v729 = vpop.permute.xlu0 %728
    %731 = vset.pattern.permute.xlu0 1
    %732 = vperm.xlu0 %731, %v676
    %v733 = vpop.permute.xlu0 %732
    %735 = vset.pattern.permute.xlu0 1
    %736 = vperm.xlu0 %735, %v678
    %v737 = vpop.permute.xlu0 %736
    %v739 = vmul.f32 %v393, %v725
    %v740 = vmul.f32 %v395, %v725
    %v741 = vmul.f32 %v397, %v729
    %v742 = vmul.f32 %v399, %v729
    %v743 = vmul.f32 %v403, %v733
    %v744 = vmul.f32 %v405, %v733
    %v745 = vmul.f32 %v407, %v737
    %v746 = vmul.f32 %v409, %v737
    %v747 = vadd.f32 %v739, %v64
    %v748 = vadd.f32 %v740, %v65
    %v749 = vadd.f32 %v741, %v68
    %v750 = vadd.f32 %v742, %v69
    %v751 = vadd.f32 %v743, %v72
    %v752 = vadd.f32 %v744, %v73
    %v753 = vadd.f32 %v745, %v76
    %v754 = vadd.f32 %v746, %v77
    %755 = vst [vmem:[#allocation7 + $0x10] sm:$0xff] %v747
    %756 = vst [vmem:[#allocation7 + $0x18] sm:$0xff] %v748
    %757 = vst [vmem:[#allocation7 + $0x30] sm:$0xff] %v749
    %758 = vst [vmem:[#allocation7 + $0x38] sm:$0xff] %v750
    %759 = vst [vmem:[#allocation7 + $0x50] sm:$0xff] %v751
    %760 = vst [vmem:[#allocation7 + $0x58] sm:$0xff] %v752
    %761 = vst [vmem:[#allocation7 + $0x70] sm:$0xff] %v753
    %762 = vst [vmem:[#allocation7 + $0x78] sm:$0xff] %v754
    // Predicated region
    $region46: #{tpu_custom_call.1} parent=1 // pred_check
      _
    $region47: #{tpu_custom_call.1} parent=1 // pred_check_branch
      %764 = sbr.rel (0) target = $region49
    $region48: #{tpu_custom_call.1} parent=1 // pred_region
      %s766 = ssub.s32 2048, 2048
      %767 = vsyncadd [#allocation4], %s766
      %s768 = sshll.u32 [#allocation7], 4
      %s769 = int_to_ptr.vmem [resolvable:$true] %s768
      %774 = dma.vmem_to_hbm [thread:$0]  %s769, 2048, %s9, [#allocation4], 512, 512, 32
    $region49: #{tpu_custom_call.1} parent=1 // pred_fallthru
      _
    // Predicated region
    $region50: #{tpu_custom_call.1} parent=1 // pred_check
      _
    $region51: #{tpu_custom_call.1} parent=1 // pred_check_branch
      %776 = sbr.rel (0) target = $region53
    $region52: #{tpu_custom_call.1} parent=1 // pred_region
      %777 = dma.done [#allocation4], 2048
    $region53: #{tpu_custom_call.1} parent=1 // pred_fallthru
      _
    %778 = vsyncpa [#allocation3], 1
    %779 = vsyncpa [#allocation6], 1
    %780 = vsyncpa [#allocation4], 1

// kernel: tpu_custom_call.1
$region0: #{tpu_custom_call.1}
  #allocation0 [shape = 'u32[]', space=smem, size = 0x4, offset = 0x4, fixed_abs, tag = 'smem constant byte address 0x4 - core index']
  #allocation1 [shape = 'u32[144,128]{1,0:T(1,128)}', space=vmem, size = 0x12000, scoped, tag = 'internal scratch']
  %s0 = inlined_call_operand.vmem [shape: f32[32,512], index: 0, kind: input, shape index: {}]
  %s1 = inlined_call_operand.hbm [shape: bf16[32,32], index: 1, kind: input, shape index: {}]
  %s2 = inlined_call_operand.vmem [shape: f32[32,1], index: 2, kind: input, shape index: {}]
  %s3 = inlined_call_operand.hbm [shape: bf16[32,32], index: 3, kind: input, shape index: {}]
  %s4 = inlined_call_operand.vmem [shape: f32[32,1], index: 4, kind: input, shape index: {}]
  %s5 = inlined_call_operand.vmem [shape: f32[2,32], index: 5, kind: input, shape index: {}]
  %s6 = inlined_call_operand.vmem [shape: f32[2,1], index: 6, kind: input, shape index: {}]
  %s7 = inlined_call_operand.vmem [shape: f32[32,2], index: 7, kind: input, shape index: {}]
  %s8 = inlined_call_operand.vmem [shape: f32[32,1], index: 8, kind: input, shape index: {}]
  %s9 = inlined_call_operand.hbm [shape: f32[32,512], index: 9, kind: output, shape index: {}]
  %s10 = sld [smem:[#allocation0]]
  $region54: #{tpu_custom_call.1} parent=0
    _
  %s12 = ssub.s32 1, %s10
  %s13 = scalar_select 0, %s12, %s10
  $region1: #{tpu_custom_call.1} parent=0
    #allocation2 [shape = 'u8[8192]{0}', space=vmem, size = 0x2000, scoped, tag = 'input window, operand 1, single buffered']
    #allocation3 [shape = 's32[1]{0}', space=sflag, size = 0x4, scoped, tag = 'scoped memory for tpu_custom_call.1']
    #allocation4 [shape = 's32[1]{0}', space=sflag, size = 0x4, scoped, tag = 'scoped memory for tpu_custom_call.1']
    #allocation5 [shape = 'u8[8192]{0}', space=vmem, size = 0x2000, scoped, tag = 'input window, operand 3, single buffered']
    #allocation6 [shape = 's32[1]{0}', space=sflag, size = 0x4, scoped, tag = 'scoped memory for tpu_custom_call.1']
    #allocation7 [shape = 'u8[65536]{0}', space=vmem, size = 0x10000, scoped, tag = 'output window, operand 0, single buffered']
    %14 = vsyncpa [#allocation3], 0
    %15 = vsyncpa [#allocation6], 0
    %16 = vsyncpa [#allocation4], 0
    // Predicated region
    $region2: #{tpu_custom_call.1} parent=1 // pred_check
      _
    $region3: #{tpu_custom_call.1} parent=1 // pred_check_branch
      %18 = sbr.rel (0) target = $region5
    $region4: #{tpu_custom_call.1} parent=1 // pred_region
      _
    $region5: #{tpu_custom_call.1} parent=1 // pred_fallthru
      _
    // Predicated region
    $region6: #{tpu_custom_call.1} parent=1 // pred_check
      _
    $region7: #{tpu_custom_call.1} parent=1 // pred_check_branch
      %20 = sbr.rel (0) target = $region9
    $region8: #{tpu_custom_call.1} parent=1 // pred_region
      %s22 = ssub.s32 256, 256
      %23 = vsyncadd [#allocation3], %s22
      %s24 = sshll.u32 [#allocation2], 4
      %s25 = int_to_ptr.vmem [resolvable:$true] %s24
      %30 = dma.hbm_to_vmem [thread:$0]  %s1, 256, %s25, [#allocation3], 64, 64, 4
    $region9: #{tpu_custom_call.1} parent=1 // pred_fallthru
      _
    // Predicated region
    $region10: #{tpu_custom_call.1} parent=1 // pred_check
      _
    $region11: #{tpu_custom_call.1} parent=1 // pred_check_branch
      %32 = sbr.rel (0) target = $region13
    $region12: #{tpu_custom_call.1} parent=1 // pred_region
      _
    $region13: #{tpu_custom_call.1} parent=1 // pred_fallthru
      _
    // Predicated region
    $region14: #{tpu_custom_call.1} parent=1 // pred_check
      _
    $region15: #{tpu_custom_call.1} parent=1 // pred_check_branch
      %34 = sbr.rel (0) target = $region17
    $region16: #{tpu_custom_call.1} parent=1 // pred_region
      %s36 = ssub.s32 256, 256
      %37 = vsyncadd [#allocation6], %s36
      %s38 = sshll.u32 [#allocation5], 4
      %s39 = int_to_ptr.vmem [resolvable:$true] %s38
      %44 = dma.hbm_to_vmem [thread:$0]  %s3, 256, %s39, [#allocation6], 64, 64, 4
    $region17: #{tpu_custom_call.1} parent=1 // pred_fallthru
      _
    // Predicated region
    $region18: #{tpu_custom_call.1} parent=1 // pred_check
      _
    $region19: #{tpu_custom_call.1} parent=1 // pred_check_branch
      %46 = sbr.rel (0) target = $region21
    $region20: #{tpu_custom_call.1} parent=1 // pred_region
      _
    $region21: #{tpu_custom_call.1} parent=1 // pred_fallthru
      _
    // Predicated region
    $region22: #{tpu_custom_call.1} parent=1 // pred_check
      _
    $region23: #{tpu_custom_call.1} parent=1 // pred_check_branch
      %48 = sbr.rel (0) target = $region25
    $region24: #{tpu_custom_call.1} parent=1 // pred_region
      _
    $region25: #{tpu_custom_call.1} parent=1 // pred_fallthru
      _
    // Predicated region
    $region26: #{tpu_custom_call.1} parent=1 // pred_check
      _
    $region27: #{tpu_custom_call.1} parent=1 // pred_check_branch
      %50 = sbr.rel (0) target = $region29
    $region28: #{tpu_custom_call.1} parent=1 // pred_region
      _
    $region29: #{tpu_custom_call.1} parent=1 // pred_fallthru
      _
    // Predicated region
    $region30: #{tpu_custom_call.1} parent=1 // pred_check
      _
    $region31: #{tpu_custom_call.1} parent=1 // pred_check_branch
      %52 = sbr.rel (0) target = $region33
    $region32: #{tpu_custom_call.1} parent=1 // pred_region
      _
    $region33: #{tpu_custom_call.1} parent=1 // pred_fallthru
      _
    // Predicated region
    $region34: #{tpu_custom_call.1} parent=1 // pred_check
      _
    $region35: #{tpu_custom_call.1} parent=1 // pred_check_branch
      %54 = sbr.rel (0) target = $region37
    $region36: #{tpu_custom_call.1} parent=1 // pred_region
      _
    $region37: #{tpu_custom_call.1} parent=1 // pred_fallthru
      _
    // Predicated region
    $region38: #{tpu_custom_call.1} parent=1 // pred_check
      _
    $region39: #{tpu_custom_call.1} parent=1 // pred_check_branch
      %56 = sbr.rel (0) target = $region41
    $region40: #{tpu_custom_call.1} parent=1 // pred_region
      %57 = dma.done [#allocation3], 256
    $region41: #{tpu_custom_call.1} parent=1 // pred_fallthru
      _
    // Predicated region
    $region42: #{tpu_custom_call.1} parent=1 // pred_check
      _
    $region43: #{tpu_custom_call.1} parent=1 // pred_check_branch
      %59 = sbr.rel (0) target = $region45
    $region44: #{tpu_custom_call.1} parent=1 // pred_region
      %60 = dma.done [#allocation6], 256
    $region45: #{tpu_custom_call.1} parent=1 // pred_fallthru
      _
    %v62 = vld [vmem:[%s0] sm:$0xff]
    %v63 = vld [vmem:[%s0 + $0x8] sm:$0xff]
    %v64 = vld [vmem:[%s0 + $0x10] sm:$0xff]
    %v65 = vld [vmem:[%s0 + $0x18] sm:$0xff]
    %v66 = vld [vmem:[%s0 + $0x20] sm:$0xff]
    %v67 = vld [vmem:[%s0 + $0x28] sm:$0xff]
    %v68 = vld [vmem:[%s0 + $0x30] sm:$0xff]
    %v69 = vld [vmem:[%s0 + $0x38] sm:$0xff]
    %v70 = vld [vmem:[%s0 + $0x40] sm:$0xff]
    %v71 = vld [vmem:[%s0 + $0x48] sm:$0xff]
    %v72 = vld [vmem:[%s0 + $0x50] sm:$0xff]
    %v73 = vld [vmem:[%s0 + $0x58] sm:$0xff]
    %v74 = vld [vmem:[%s0 + $0x60] sm:$0xff]
    %v75 = vld [vmem:[%s0 + $0x68] sm:$0xff]
    %v76 = vld [vmem:[%s0 + $0x70] sm:$0xff]
    %v77 = vld [vmem:[%s0 + $0x78] sm:$0xff]
    %v78 = vld [vmem:[#allocation2] sm:$0xf]
    %v79 = vld [vmem:[#allocation2 + $0x4] sm:$0xf]
    %v80 = vld [vmem:[#allocation2 + $0x8] sm:$0xf]
    %v81 = vld [vmem:[#allocation2 + $0xc] sm:$0xf]
    %v82 = vpack.c.bf16 %v66, %v62
    %v83 = vpack.c.bf16 %v67, %v63
    %v84 = vpack.c.bf16 %v68, %v64
    %v85 = vpack.c.bf16 %v69, %v65
    %v86 = vpack.c.bf16 %v74, %v70
    %v87 = vpack.c.bf16 %v75, %v71
    %v88 = vpack.c.bf16 %v76, %v72
    %v89 = vpack.c.bf16 %v77, %v73
    %v90 = vld [vmem:[%s2] sm:$0xff]
    %v91 = vld [vmem:[%s2 + $0x8] sm:$0xff]
    %v92 = vld [vmem:[%s2 + $0x10] sm:$0xff]
    %v93 = vld [vmem:[%s2 + $0x18] sm:$0xff]
    %95 = vset.pattern.permute.xlu0 0
    %96 = vperm.xlu0 %95, %v90
    %v97 = vpop.permute.xlu0 %96
    %100 = vset.pattern.permute.xlu0 0
    %101 = vperm.xlu0 %100, %v91
    %v102 = vpop.permute.xlu0 %101
    %105 = vset.pattern.permute.xlu0 0
    %106 = vperm.xlu0 %105, %v92
    %v107 = vpop.permute.xlu0 %106
    %110 = vset.pattern.permute.xlu0 0
    %111 = vperm.xlu0 %110, %v93
    %v112 = vpop.permute.xlu0 %111
    %v118 = vunpack.c.l.b16 %v78
    %v119 = vunpack.c.l.b16 %v79
    %v120 = vunpack.c.l.b16 %v80
    %v121 = vunpack.c.l.b16 %v81
    %v122 = vpack.c.b16 %v119, %v118
    %v123 = vpack.c.b16 %v121, %v120
    %vm124 = vcmask 261120
    %v126 = vsel %vm124, %v122, 0
    %v129 = vsel %vm124, %v123, 0
    %131 = vmatprep.subr.bf16.mxu0 0
    %132 = vmatpush1.bf16.msra.mxu0 0
    %133 = vmatprep.subr.bf16.mxu0 0
    %134 = vmatpush1.bf16.msra.mxu0 0
    %135 = vmatprep.subr.bf16.mxu0 0
    %136 = vmatpush1.bf16.msra.mxu0 0
    %137 = vmatprep.subr.bf16.mxu0 0
    %138 = vmatpush1.bf16.msra.mxu0 0
    %139 = vmatprep.subr.bf16.mxu0 0
    %140 = vmatpush1.bf16.msra.mxu0 0
    %141 = vmatprep.subr.bf16.mxu0 0
    %142 = vmatpush1.bf16.msra.mxu0 0
    %143 = vmatprep.subr.bf16.mxu0 %v87
    %144 = vmatpush1.bf16.msra.mxu0 %v86
    %145 = vmatprep.subr.bf16.mxu0 %v83
    %146 = vmatpush1.bf16.msra.mxu0 %v82
    %147 = vmatprep.subr.bf16.mxu0 0
    %148 = vmatpush2.bf16.msra.mxu0 0
    %149 = vmatprep.subr.bf16.mxu0 0
    %150 = vmatpush2.bf16.msra.mxu0 0
    %151 = vmatprep.subr.bf16.mxu0 0
    %152 = vmatpush2.bf16.msra.mxu0 0
    %153 = vmatprep.subr.bf16.mxu0 0
    %154 = vmatpush2.bf16.msra.mxu0 0
    %155 = vmatprep.subr.bf16.mxu0 0
    %156 = vmatpush2.bf16.msra.mxu0 0
    %157 = vmatprep.subr.bf16.mxu0 0
    %158 = vmatpush2.bf16.msra.mxu0 0
    %159 = vmatprep.subr.bf16.mxu0 0
    %160 = vmatpush2.bf16.msra.mxu0 0
    %161 = vmatprep.subr.bf16.mxu0 0
    %162 = vmatpush2.bf16.msra.mxu0 0
    %163 = vmatprep.mubr.bf16.mxu0 0
    %164 = vmatmul.mubr.bf16.gmra.mxu0 %v126
    %v165 = vpop.f32.mrf.mxu0
    %v166 = vadd.f32 %v97, %v165
    %v167 = vpop.f32.mrf.mxu0
    %v168 = vadd.f32 %v97, %v167
    %v169 = vpop.f32.mrf.mxu0
    %v170 = vadd.f32 %v102, %v169
    %v171 = vpop.f32.mrf.mxu0
    %v172 = vadd.f32 %v102, %v171
    %173 = vmatprep.mubr.bf16.mxu0 0
    %174 = vmatmul.mubr.bf16.gmra.mxu0 %v129
    %v175 = vpop.f32.mrf.mxu0
    %v176 = vadd.f32 %v107, %v175
    %v177 = vpop.f32.mrf.mxu0
    %v178 = vadd.f32 %v107, %v177
    %v179 = vpop.f32.mrf.mxu0
    %v180 = vadd.f32 %v112, %v179
    %v181 = vpop.f32.mrf.mxu0
    %v182 = vadd.f32 %v112, %v181
    %183 = vdwg.mxu0
    %184 = vmatprep.subr.bf16.mxu0 0
    %185 = vmatpush1.bf16.msra.mxu0 0
    %186 = vmatprep.subr.bf16.mxu0 0
    %187 = vmatpush1.bf16.msra.mxu0 0
    %188 = vmatprep.subr.bf16.mxu0 0
    %189 = vmatpush1.bf16.msra.mxu0 0
    %190 = vmatprep.subr.bf16.mxu0 0
    %191 = vmatpush1.bf16.msra.mxu0 0
    %192 = vmatprep.subr.bf16.mxu0 0
    %193 = vmatpush1.bf16.msra.mxu0 0
    %194 = vmatprep.subr.bf16.mxu0 0
    %195 = vmatpush1.bf16.msra.mxu0 0
    %196 = vmatprep.subr.bf16.mxu0 %v89
    %197 = vmatpush1.bf16.msra.mxu0 %v88
    %198 = vmatprep.subr.bf16.mxu0 %v85
    %199 = vmatpush1.bf16.msra.mxu0 %v84
    %200 = vmatprep.subr.bf16.mxu0 0
    %201 = vmatpush2.bf16.msra.mxu0 0
    %202 = vmatprep.subr.bf16.mxu0 0
    %203 = vmatpush2.bf16.msra.mxu0 0
    %204 = vmatprep.subr.bf16.mxu0 0
    %205 = vmatpush2.bf16.msra.mxu0 0
    %206 = vmatprep.subr.bf16.mxu0 0
    %207 = vmatpush2.bf16.msra.mxu0 0
    %208 = vmatprep.subr.bf16.mxu0 0
    %209 = vmatpush2.bf16.msra.mxu0 0
    %210 = vmatprep.subr.bf16.mxu0 0
    %211 = vmatpush2.bf16.msra.mxu0 0
    %212 = vmatprep.subr.bf16.mxu0 0
    %213 = vmatpush2.bf16.msra.mxu0 0
    %214 = vmatprep.subr.bf16.mxu0 0
    %215 = vmatpush2.bf16.msra.mxu0 0
    %216 = vmatprep.mubr.bf16.mxu0 0
    %217 = vmatmul.mubr.bf16.gmra.mxu0 %v126
    %v218 = vpop.f32.mrf.mxu0
    %v219 = vadd.f32 %v97, %v218
    %v220 = vpop.f32.mrf.mxu0
    %v221 = vadd.f32 %v97, %v220
    %v222 = vpop.f32.mrf.mxu0
    %v223 = vadd.f32 %v102, %v222
    %v224 = vpop.f32.mrf.mxu0
    %v225 = vadd.f32 %v102, %v224
    %226 = vmatprep.mubr.bf16.mxu0 0
    %227 = vmatmul.mubr.bf16.gmra.mxu0 %v129
    %v228 = vpop.f32.mrf.mxu0
    %v229 = vadd.f32 %v107, %v228
    %v230 = vpop.f32.mrf.mxu0
    %v231 = vadd.f32 %v107, %v230
    %v232 = vpop.f32.mrf.mxu0
    %v233 = vadd.f32 %v112, %v232
    %v234 = vpop.f32.mrf.mxu0
    %v235 = vadd.f32 %v112, %v234
    %236 = vdwg.mxu0
    %v237 = vmax.f32 %v166, 0.0
    %v238 = vmax.f32 %v168, 0.0
    %v239 = vmax.f32 %v219, 0.0
    %v240 = vmax.f32 %v221, 0.0
    %v241 = vmax.f32 %v170, 0.0
    %v242 = vmax.f32 %v172, 0.0
    %v243 = vmax.f32 %v223, 0.0
    %v244 = vmax.f32 %v225, 0.0
    %v245 = vmax.f32 %v176, 0.0
    %v246 = vmax.f32 %v178, 0.0
    %v247 = vmax.f32 %v229, 0.0
    %v248 = vmax.f32 %v231, 0.0
    %v249 = vmax.f32 %v180, 0.0
    %v250 = vmax.f32 %v182, 0.0
    %v251 = vmax.f32 %v233, 0.0
    %v252 = vmax.f32 %v235, 0.0
    %v253 = vld [vmem:[#allocation5] sm:$0xf]
    %v254 = vld [vmem:[#allocation5 + $0x4] sm:$0xf]
    %v255 = vld [vmem:[#allocation5 + $0x8] sm:$0xf]
    %v256 = vld [vmem:[#allocation5 + $0xc] sm:$0xf]
    %v257 = vpack.c.bf16 %v241, %v237
    %v258 = vpack.c.bf16 %v242, %v238
    %v259 = vpack.c.bf16 %v243, %v239
    %v260 = vpack.c.bf16 %v244, %v240
    %v261 = vpack.c.bf16 %v249, %v245
    %v262 = vpack.c.bf16 %v250, %v246
    %v263 = vpack.c.bf16 %v251, %v247
    %v264 = vpack.c.bf16 %v252, %v248
    %v265 = vld [vmem:[%s4] sm:$0xff]
    %v266 = vld [vmem:[%s4 + $0x8] sm:$0xff]
    %v267 = vld [vmem:[%s4 + $0x10] sm:$0xff]
    %v268 = vld [vmem:[%s4 + $0x18] sm:$0xff]
    %270 = vset.pattern.permute.xlu0 0
    %271 = vperm.xlu0 %270, %v265
    %v272 = vpop.permute.xlu0 %271
    %275 = vset.pattern.permute.xlu0 0
    %276 = vperm.xlu0 %275, %v266
    %v277 = vpop.permute.xlu0 %276
    %280 = vset.pattern.permute.xlu0 0
    %281 = vperm.xlu0 %280, %v267
    %v282 = vpop.permute.xlu0 %281
    %285 = vset.pattern.permute.xlu0 0
    %286 = vperm.xlu0 %285, %v268
    %v287 = vpop.permute.xlu0 %286
    %v293 = vunpack.c.l.b16 %v253
    %v294 = vunpack.c.l.b16 %v254
    %v295 = vunpack.c.l.b16 %v255
    %v296 = vunpack.c.l.b16 %v256
    %v297 = vpack.c.b16 %v294, %v293
    %v298 = vpack.c.b16 %v296, %v295
    %v300 = vsel %vm124, %v297, 0
    %v303 = vsel %vm124, %v298, 0
    %305 = vmatprep.subr.bf16.mxu0 0
    %306 = vmatpush1.bf16.msra.mxu0 0
    %307 = vmatprep.subr.bf16.mxu0 0
    %308 = vmatpush1.bf16.msra.mxu0 0
    %309 = vmatprep.subr.bf16.mxu0 0
    %310 = vmatpush1.bf16.msra.mxu0 0
    %311 = vmatprep.subr.bf16.mxu0 0
    %312 = vmatpush1.bf16.msra.mxu0 0
    %313 = vmatprep.subr.bf16.mxu0 0
    %314 = vmatpush1.bf16.msra.mxu0 0
    %315 = vmatprep.subr.bf16.mxu0 0
    %316 = vmatpush1.bf16.msra.mxu0 0
    %317 = vmatprep.subr.bf16.mxu0 %v262
    %318 = vmatpush1.bf16.msra.mxu0 %v261
    %319 = vmatprep.subr.bf16.mxu0 %v258
    %320 = vmatpush1.bf16.msra.mxu0 %v257
    %321 = vmatprep.subr.bf16.mxu0 0
    %322 = vmatpush2.bf16.msra.mxu0 0
    %323 = vmatprep.subr.bf16.mxu0 0
    %324 = vmatpush2.bf16.msra.mxu0 0
    %325 = vmatprep.subr.bf16.mxu0 0
    %326 = vmatpush2.bf16.msra.mxu0 0
    %327 = vmatprep.subr.bf16.mxu0 0
    %328 = vmatpush2.bf16.msra.mxu0 0
    %329 = vmatprep.subr.bf16.mxu0 0
    %330 = vmatpush2.bf16.msra.mxu0 0
    %331 = vmatprep.subr.bf16.mxu0 0
    %332 = vmatpush2.bf16.msra.mxu0 0
    %333 = vmatprep.subr.bf16.mxu0 0
    %334 = vmatpush2.bf16.msra.mxu0 0
    %335 = vmatprep.subr.bf16.mxu0 0
    %336 = vmatpush2.bf16.msra.mxu0 0
    %337 = vmatprep.mubr.bf16.mxu0 0
    %338 = vmatmul.mubr.bf16.gmra.mxu0 %v300
    %v339 = vpop.f32.mrf.mxu0
    %v340 = vadd.f32 %v272, %v339
    %v341 = vpop.f32.mrf.mxu0
    %v342 = vadd.f32 %v272, %v341
    %v343 = vpop.f32.mrf.mxu0
    %v344 = vadd.f32 %v277, %v343
    %v345 = vpop.f32.mrf.mxu0
    %v346 = vadd.f32 %v277, %v345
    %347 = vmatprep.mubr.bf16.mxu0 0
    %348 = vmatmul.mubr.bf16.gmra.mxu0 %v303
    %v349 = vpop.f32.mrf.mxu0
    %v350 = vadd.f32 %v282, %v349
    %v351 = vpop.f32.mrf.mxu0
    %v352 = vadd.f32 %v282, %v351
    %v353 = vpop.f32.mrf.mxu0
    %v354 = vadd.f32 %v287, %v353
    %v355 = vpop.f32.mrf.mxu0
    %v356 = vadd.f32 %v287, %v355
    %357 = vdwg.mxu0
    %358 = vmatprep.subr.bf16.mxu0 0
    %359 = vmatpush1.bf16.msra.mxu0 0
    %360 = vmatprep.subr.bf16.mxu0 0
    %361 = vmatpush1.bf16.msra.mxu0 0
    %362 = vmatprep.subr.bf16.mxu0 0
    %363 = vmatpush1.bf16.msra.mxu0 0
    %364 = vmatprep.subr.bf16.mxu0 0
    %365 = vmatpush1.bf16.msra.mxu0 0
    %366 = vmatprep.subr.bf16.mxu0 0
    %367 = vmatpush1.bf16.msra.mxu0 0
    %368 = vmatprep.subr.bf16.mxu0 0
    %369 = vmatpush1.bf16.msra.mxu0 0
    %370 = vmatprep.subr.bf16.mxu0 %v264
    %371 = vmatpush1.bf16.msra.mxu0 %v263
    %372 = vmatprep.subr.bf16.mxu0 %v260
    %373 = vmatpush1.bf16.msra.mxu0 %v259
    %374 = vmatprep.subr.bf16.mxu0 0
    %375 = vmatpush2.bf16.msra.mxu0 0
    %376 = vmatprep.subr.bf16.mxu0 0
    %377 = vmatpush2.bf16.msra.mxu0 0
    %378 = vmatprep.subr.bf16.mxu0 0
    %379 = vmatpush2.bf16.msra.mxu0 0
    %380 = vmatprep.subr.bf16.mxu0 0
    %381 = vmatpush2.bf16.msra.mxu0 0
    %382 = vmatprep.subr.bf16.mxu0 0
    %383 = vmatpush2.bf16.msra.mxu0 0
    %384 = vmatprep.subr.bf16.mxu0 0
    %385 = vmatpush2.bf16.msra.mxu0 0
    %386 = vmatprep.subr.bf16.mxu0 0
    %387 = vmatpush2.bf16.msra.mxu0 0
    %388 = vmatprep.subr.bf16.mxu0 0
    %389 = vmatpush2.bf16.msra.mxu0 0
    %390 = vmatprep.mubr.bf16.mxu0 0
    %391 = vmatmul.mubr.bf16.gmra.mxu0 %v300
    %v392 = vpop.f32.mrf.mxu0
    %v393 = vadd.f32 %v272, %v392
    %v394 = vpop.f32.mrf.mxu0
    %v395 = vadd.f32 %v272, %v394
    %v396 = vpop.f32.mrf.mxu0
    %v397 = vadd.f32 %v277, %v396
    %v398 = vpop.f32.mrf.mxu0
    %v399 = vadd.f32 %v277, %v398
    %400 = vmatprep.mubr.bf16.mxu0 0
    %401 = vmatmul.mubr.bf16.gmra.mxu0 %v303
    %v402 = vpop.f32.mrf.mxu0
    %v403 = vadd.f32 %v282, %v402
    %v404 = vpop.f32.mrf.mxu0
    %v405 = vadd.f32 %v282, %v404
    %v406 = vpop.f32.mrf.mxu0
    %v407 = vadd.f32 %v287, %v406
    %v408 = vpop.f32.mrf.mxu0
    %v409 = vadd.f32 %v287, %v408
    %410 = vdwg.mxu0
    %v411 = vadd.f32 %v340, %v342
    %412 = vadd.xlane.f32.xlu0 %v411
    %v413 = vpop.xlane.xlu0 %412
    %v414 = vadd.f32 %v344, %v346
    %415 = vadd.xlane.f32.xlu0 %v414
    %v416 = vpop.xlane.xlu0 %415
    %v417 = vadd.f32 %v350, %v352
    %418 = vadd.xlane.f32.xlu0 %v417
    %v419 = vpop.xlane.xlu0 %418
    %v420 = vadd.f32 %v354, %v356
    %421 = vadd.xlane.f32.xlu0 %v420
    %v422 = vpop.xlane.xlu0 %421
    %v423 = vadd.f32 %v393, %v395
    %424 = vadd.xlane.f32.xlu0 %v423
    %v425 = vpop.xlane.xlu0 %424
    %v426 = vadd.f32 %v397, %v399
    %427 = vadd.xlane.f32.xlu0 %v426
    %v428 = vpop.xlane.xlu0 %427
    %v429 = vadd.f32 %v403, %v405
    %430 = vadd.xlane.f32.xlu0 %v429
    %v431 = vpop.xlane.xlu0 %430
    %v432 = vadd.f32 %v407, %v409
    %433 = vadd.xlane.f32.xlu0 %v432
    %v434 = vpop.xlane.xlu0 %433
    %vm435 = vcmask 7168
    %v436 = vsel %vm435, %v413, %v425
    %v437 = vsel %vm435, %v416, %v428
    %v438 = vsel %vm435, %v419, %v431
    %v439 = vsel %vm435, %v422, %v434
    %v440 = vmul.f32 %v436, 0.00390625
    %v441 = vmul.f32 %v437, 0.00390625
    %v442 = vmul.f32 %v438, 0.00390625
    %v443 = vmul.f32 %v439, 0.00390625
    %v444 = vld [vmem:[%s5] sm:$0x3]
    %v445 = vld [vmem:[%s6] sm:$0x3]
    %447 = vset.pattern.permute.xlu0 0
    %448 = vperm.xlu0 %447, %v445
    %v449 = vpop.permute.xlu0 %448
    %v452 = vsel %vm124, %v444, 0
    %454 = vmatprep.subr.mxu0 0.0
    %455 = vmatpush1.msra.mxu0 0.0
    %456 = vmatprep.subr.mxu0 0.0
    %457 = vmatpush1.msra.mxu0 0.0
    %458 = vmatprep.subr.mxu0 0.0
    %459 = vmatpush1.msra.mxu0 0.0
    %460 = vmatprep.subr.mxu0 0.0
    %461 = vmatpush1.msra.mxu0 0.0
    %462 = vmatprep.subr.mxu0 0.0
    %463 = vmatpush1.msra.mxu0 0.0
    %464 = vmatprep.subr.mxu0 0.0
    %465 = vmatpush1.msra.mxu0 0.0
    %466 = vmatprep.subr.mxu0 0.0
    %467 = vmatpush1.msra.mxu0 0.0
    %468 = vmatprep.subr.mxu0 0.0
    %469 = vmatpush1.msra.mxu0 0.0
    %470 = vmatprep.subr.mxu0 0.0
    %471 = vmatpush1.msra.mxu0 0.0
    %472 = vmatprep.subr.mxu0 0.0
    %473 = vmatpush1.msra.mxu0 0.0
    %474 = vmatprep.subr.mxu0 0.0
    %475 = vmatpush1.msra.mxu0 0.0
    %476 = vmatprep.subr.mxu0 0.0
    %477 = vmatpush1.msra.mxu0 0.0
    %478 = vmatprep.subr.mxu0 0.0
    %479 = vmatpush1.msra.mxu0 %v443
    %480 = vmatprep.subr.mxu0 0.0
    %481 = vmatpush1.msra.mxu0 %v442
    %482 = vmatprep.subr.mxu0 0.0
    %483 = vmatpush1.msra.mxu0 %v441
    %484 = vmatprep.subr.mxu0 0.0
    %485 = vmatpush1.msra.mxu0 %v440
    %486 = vmatprep.subr.mxu0 0.0
    %487 = vmatpush2.msra.mxu0 0.0
    %488 = vmatprep.subr.mxu0 0.0
    %489 = vmatpush2.msra.mxu0 0.0
    %490 = vmatprep.subr.mxu0 0.0
    %491 = vmatpush2.msra.mxu0 0.0
    %492 = vmatprep.subr.mxu0 0.0
    %493 = vmatpush2.msra.mxu0 0.0
    %494 = vmatprep.subr.mxu0 0.0
    %495 = vmatpush2.msra.mxu0 0.0
    %496 = vmatprep.subr.mxu0 0.0
    %497 = vmatpush2.msra.mxu0 0.0
    %498 = vmatprep.subr.mxu0 0.0
    %499 = vmatpush2.msra.mxu0 0.0
    %500 = vmatprep.subr.mxu0 0.0
    %501 = vmatpush2.msra.mxu0 0.0
    %502 = vmatprep.subr.mxu0 0.0
    %503 = vmatpush2.msra.mxu0 0.0
    %504 = vmatprep.subr.mxu0 0.0
    %505 = vmatpush2.msra.mxu0 0.0
    %506 = vmatprep.subr.mxu0 0.0
    %507 = vmatpush2.msra.mxu0 0.0
    %508 = vmatprep.subr.mxu0 0.0
    %509 = vmatpush2.msra.mxu0 0.0
    %510 = vmatprep.subr.mxu0 0.0
    %511 = vmatpush2.msra.mxu0 0.0
    %512 = vmatprep.subr.mxu0 0.0
    %513 = vmatpush2.msra.mxu0 0.0
    %514 = vmatprep.subr.mxu0 0.0
    %515 = vmatpush2.msra.mxu0 0.0
    %516 = vmatprep.subr.mxu0 0.0
    %517 = vmatpush2.msra.mxu0 0.0
    %518 = vmatprep.mubr.f32.mxu0 0.0
    %519 = vmatmul.mubr.f32.gmra.mxu0 %v452
    %v520 = vpop.f32.mrf.mxu0
    %v521 = vadd.f32 %v449, %v520
    %v522 = vpop.f32.mrf.mxu0
    %523 = vdwg.mxu0
    %v524 = vmax.f32 %v521, 0.0
    %v525 = vld [vmem:[%s7] sm:$0xff]
    %v526 = vld [vmem:[%s7 + $0x8] sm:$0xff]
    %v527 = vld [vmem:[%s7 + $0x10] sm:$0xff]
    %v528 = vld [vmem:[%s7 + $0x18] sm:$0xff]
    %v529 = vld [vmem:[%s8] sm:$0xff]
    %v530 = vld [vmem:[%s8 + $0x8] sm:$0xff]
    %v531 = vld [vmem:[%s8 + $0x10] sm:$0xff]
    %v532 = vld [vmem:[%s8 + $0x18] sm:$0xff]
    %534 = vset.pattern.permute.xlu0 0
    %535 = vperm.xlu0 %534, %v529
    %v536 = vpop.permute.xlu0 %535
    %539 = vset.pattern.permute.xlu0 0
    %540 = vperm.xlu0 %539, %v530
    %v541 = vpop.permute.xlu0 %540
    %544 = vset.pattern.permute.xlu0 0
    %545 = vperm.xlu0 %544, %v531
    %v546 = vpop.permute.xlu0 %545
    %549 = vset.pattern.permute.xlu0 0
    %550 = vperm.xlu0 %549, %v532
    %v551 = vpop.permute.xlu0 %550
    %vm553 = vcmask 15360
    %v555 = vsel %vm553, %v525, 0
    %v558 = vsel %vm553, %v526, 0
    %v561 = vsel %vm553, %v527, 0
    %v564 = vsel %vm553, %v528, 0
    %vm566 = vcmask 1041408
    %v568 = vsel %vm566, %v524, 0
    %570 = vmatprep.subr.mxu0 0.0
    %571 = vmatpush1.msra.mxu0 0.0
    %572 = vmatprep.subr.mxu0 0.0
    %573 = vmatpush1.msra.mxu0 0.0
    %574 = vmatprep.subr.mxu0 0.0
    %575 = vmatpush1.msra.mxu0 0.0
    %576 = vmatprep.subr.mxu0 0.0
    %577 = vmatpush1.msra.mxu0 0.0
    %578 = vmatprep.subr.mxu0 0.0
    %579 = vmatpush1.msra.mxu0 0.0
    %580 = vmatprep.subr.mxu0 0.0
    %581 = vmatpush1.msra.mxu0 0.0
    %582 = vmatprep.subr.mxu0 0.0
    %583 = vmatpush1.msra.mxu0 0.0
    %584 = vmatprep.subr.mxu0 0.0
    %585 = vmatpush1.msra.mxu0 0.0
    %586 = vmatprep.subr.mxu0 0.0
    %587 = vmatpush1.msra.mxu0 0.0
    %588 = vmatprep.subr.mxu0 0.0
    %589 = vmatpush1.msra.mxu0 0.0
    %590 = vmatprep.subr.mxu0 0.0
    %591 = vmatpush1.msra.mxu0 0.0
    %592 = vmatprep.subr.mxu0 0.0
    %593 = vmatpush1.msra.mxu0 0.0
    %594 = vmatprep.subr.mxu0 0.0
    %595 = vmatpush1.msra.mxu0 0.0
    %596 = vmatprep.subr.mxu0 0.0
    %597 = vmatpush1.msra.mxu0 0.0
    %598 = vmatprep.subr.mxu0 0.0
    %599 = vmatpush1.msra.mxu0 0.0
    %600 = vmatprep.subr.mxu0 0.0
    %601 = vmatpush1.msra.mxu0 %v568
    %602 = vmatprep.subr.mxu0 0.0
    %603 = vmatpush2.msra.mxu0 0.0
    %604 = vmatprep.subr.mxu0 0.0
    %605 = vmatpush2.msra.mxu0 0.0
    %606 = vmatprep.subr.mxu0 0.0
    %607 = vmatpush2.msra.mxu0 0.0
    %608 = vmatprep.subr.mxu0 0.0
    %609 = vmatpush2.msra.mxu0 0.0
    %610 = vmatprep.subr.mxu0 0.0
    %611 = vmatpush2.msra.mxu0 0.0
    %612 = vmatprep.subr.mxu0 0.0
    %613 = vmatpush2.msra.mxu0 0.0
    %614 = vmatprep.subr.mxu0 0.0
    %615 = vmatpush2.msra.mxu0 0.0
    %616 = vmatprep.subr.mxu0 0.0
    %617 = vmatpush2.msra.mxu0 0.0
    %618 = vmatprep.subr.mxu0 0.0
    %619 = vmatpush2.msra.mxu0 0.0
    %620 = vmatprep.subr.mxu0 0.0
    %621 = vmatpush2.msra.mxu0 0.0
    %622 = vmatprep.subr.mxu0 0.0
    %623 = vmatpush2.msra.mxu0 0.0
    %624 = vmatprep.subr.mxu0 0.0
    %625 = vmatpush2.msra.mxu0 0.0
    %626 = vmatprep.subr.mxu0 0.0
    %627 = vmatpush2.msra.mxu0 0.0
    %628 = vmatprep.subr.mxu0 0.0
    %629 = vmatpush2.msra.mxu0 0.0
    %630 = vmatprep.subr.mxu0 0.0
    %631 = vmatpush2.msra.mxu0 0.0
    %632 = vmatprep.subr.mxu0 0.0
    %633 = vmatpush2.msra.mxu0 0.0
    %634 = vmatprep.mubr.f32.mxu0 0.0
    %635 = vmatmul.mubr.f32.gmra.mxu0 %v555
    %v636 = vpop.f32.mrf.mxu0
    %v637 = vadd.f32 %v536, %v636
    %v638 = vpop.f32.mrf.mxu0
    %639 = vmatprep.mubr.f32.mxu0 0.0
    %640 = vmatmul.mubr.f32.gmra.mxu0 %v558
    %v641 = vpop.f32.mrf.mxu0
    %v642 = vadd.f32 %v541, %v641
    %v643 = vpop.f32.mrf.mxu0
    %644 = vmatprep.mubr.f32.mxu0 0.0
    %645 = vmatmul.mubr.f32.gmra.mxu0 %v561
    %v646 = vpop.f32.mrf.mxu0
    %v647 = vadd.f32 %v546, %v646
    %v648 = vpop.f32.mrf.mxu0
    %649 = vmatprep.mubr.f32.mxu0 0.0
    %650 = vmatmul.mubr.f32.gmra.mxu0 %v564
    %v651 = vpop.f32.mrf.mxu0
    %v652 = vadd.f32 %v551, %v651
    %v653 = vpop.f32.mrf.mxu0
    %654 = vdwg.mxu0
    %v655 = vxor.u32 %v637, 2147483648
    %v656 = vxor.u32 %v642, 2147483648
    %v657 = vxor.u32 %v647, 2147483648
    %v658 = vxor.u32 %v652, 2147483648
    %v659 = vmul.f32 %v655, 1.442695
    %v660 = vpow.pop %v659
    %v661 = vmul.f32 %v656, 1.442695
    %v662 = vpow.pop %v661
    %v663 = vmul.f32 %v657, 1.442695
    %v664 = vpow.pop %v663
    %v665 = vmul.f32 %v658, 1.442695
    %v666 = vpow.pop %v665
    %v667 = vadd.f32 %v660, 1.0
    %v668 = vadd.f32 %v662, 1.0
    %v669 = vadd.f32 %v664, 1.0
    %v670 = vadd.f32 %v666, 1.0
    %v671 = vrcp.pop %v667
    %v672 = vmul.f32 1.0, %v671
    %v673 = vrcp.pop %v668
    %v674 = vmul.f32 1.0, %v673
    %v675 = vrcp.pop %v669
    %v676 = vmul.f32 1.0, %v675
    %v677 = vrcp.pop %v670
    %v678 = vmul.f32 1.0, %v677
    %680 = vset.pattern.permute.xlu0 0
    %681 = vperm.xlu0 %680, %v672
    %v682 = vpop.permute.xlu0 %681
    %685 = vset.pattern.permute.xlu0 0
    %686 = vperm.xlu0 %685, %v674
    %v687 = vpop.permute.xlu0 %686
    %690 = vset.pattern.permute.xlu0 0
    %691 = vperm.xlu0 %690, %v676
    %v692 = vpop.permute.xlu0 %691
    %695 = vset.pattern.permute.xlu0 0
    %696 = vperm.xlu0 %695, %v678
    %v697 = vpop.permute.xlu0 %696
    %v699 = vmul.f32 %v340, %v682
    %v700 = vmul.f32 %v342, %v682
    %v701 = vmul.f32 %v344, %v687
    %v702 = vmul.f32 %v346, %v687
    %v703 = vmul.f32 %v350, %v692
    %v704 = vmul.f32 %v352, %v692
    %v705 = vmul.f32 %v354, %v697
    %v706 = vmul.f32 %v356, %v697
    %v707 = vadd.f32 %v699, %v62
    %v708 = vadd.f32 %v700, %v63
    %v709 = vadd.f32 %v701, %v66
    %v710 = vadd.f32 %v702, %v67
    %v711 = vadd.f32 %v703, %v70
    %v712 = vadd.f32 %v704, %v71
    %v713 = vadd.f32 %v705, %v74
    %v714 = vadd.f32 %v706, %v75
    %715 = vst [vmem:[#allocation7] sm:$0xff] %v707
    %716 = vst [vmem:[#allocation7 + $0x8] sm:$0xff] %v708
    %717 = vst [vmem:[#allocation7 + $0x20] sm:$0xff] %v709
    %718 = vst [vmem:[#allocation7 + $0x28] sm:$0xff] %v710
    %719 = vst [vmem:[#allocation7 + $0x40] sm:$0xff] %v711
    %720 = vst [vmem:[#allocation7 + $0x48] sm:$0xff] %v712
    %721 = vst [vmem:[#allocation7 + $0x60] sm:$0xff] %v713
    %722 = vst [vmem:[#allocation7 + $0x68] sm:$0xff] %v714
    %723 = vset.pattern.permute.xlu0 1
    %724 = vperm.xlu0 %723, %v672
    %v725 = vpop.permute.xlu0 %724
    %727 = vset.pattern.permute.xlu0 1
    %728 = vperm.xlu0 %727, %v674
    %v729 = vpop.permute.xlu0 %728
    %731 = vset.pattern.permute.xlu0 1
    %732 = vperm.xlu0 %731, %v676
    %v733 = vpop.permute.xlu0 %732
    %735 = vset.pattern.permute.xlu0 1
    %736 = vperm.xlu0 %735, %v678
    %v737 = vpop.permute.xlu0 %736
    %v739 = vmul.f32 %v393, %v725
    %v740 = vmul.f32 %v395, %v725
    %v741 = vmul.f32 %v397, %v729
    %v742 = vmul.f32 %v399, %v729
    %v743 = vmul.f32 %v403, %v733
    %v744 = vmul.f32 %v405, %v733
    %v745 = vmul.f32 %v407, %v737
    %v746 = vmul.f32 %v409, %v737
    %v747 = vadd.f32 %v739, %v64
    %v748 = vadd.f32 %v740, %v65
    %v749 = vadd.f32 %v741, %v68
    %v750 = vadd.f32 %v742, %v69
    %v751 = vadd.f32 %v743, %v72
    %v752 = vadd.f32 %v744, %v73
    %v753 = vadd.f32 %v745, %v76
    %v754 = vadd.f32 %v746, %v77
    %755 = vst [vmem:[#allocation7 + $0x10] sm:$0xff] %v747
    %756 = vst [vmem:[#allocation7 + $0x18] sm:$0xff] %v748
    %757 = vst [vmem:[#allocation7 + $0x30] sm:$0xff] %v749
    %758 = vst [vmem:[#allocation7 + $0x38] sm:$0xff] %v750
    %759 = vst [vmem:[#allocation7 + $0x50] sm:$0xff] %v751
    %760 = vst [vmem:[#allocation7 + $0x58] sm:$0xff] %v752
    %761 = vst [vmem:[#allocation7 + $0x70] sm:$0xff] %v753
    %762 = vst [vmem:[#allocation7 + $0x78] sm:$0xff] %v754
    // Predicated region
    $region46: #{tpu_custom_call.1} parent=1 // pred_check
      _
    $region47: #{tpu_custom_call.1} parent=1 // pred_check_branch
      %764 = sbr.rel (0) target = $region49
    $region48: #{tpu_custom_call.1} parent=1 // pred_region
      %s766 = ssub.s32 2048, 2048
      %767 = vsyncadd [#allocation4], %s766
      %s768 = sshll.u32 [#allocation7], 4
      %s769 = int_to_ptr.vmem [resolvable:$true] %s768
      %774 = dma.vmem_to_hbm [thread:$0]  %s769, 2048, %s9, [#allocation4], 512, 512, 32
    $region49: #{tpu_custom_call.1} parent=1 // pred_fallthru
      _
    // Predicated region
    $region50: #{tpu_custom_call.1} parent=1 // pred_check
      _
    $region51: #{tpu_custom_call.1} parent=1 // pred_check_branch
      %776 = sbr.rel (0) target = $region53
    $region52: #{tpu_custom_call.1} parent=1 // pred_region
      %777 = dma.done [#allocation4], 2048
    $region53: #{tpu_custom_call.1} parent=1 // pred_fallthru
      _
    %778 = vsyncpa [#allocation3], 1
    %779 = vsyncpa [#allocation6], 1
    %780 = vsyncpa [#allocation4], 1

</llo_original>
